<compile_context>
chip_gen: v5e
topology: v5e:2x2
jax: 0.10.0
libtpu: 0.0.40
codegen_flags: <defaults>
</compile_context>

<pallas_src>
import jax
import jax.numpy as jnp
from jax.experimental import pallas as pl
from jax.experimental.pallas import tpu as pltpu


def residual_dense_block(x_nchw, dense_ws, dense_bs, w_lff, b_lff):
    """x_nchw: (B, Cin, H, W) f32.  dense_ws[l]: HWIO (3, 3, c_in_l, growth).

    Returns (B, Cin, H, W) f32, matching the PyTorch ResidualDenseBlock.
    """
    B, Cin, H, W = x_nchw.shape
    num_layers = len(dense_ws)
    growth = dense_ws[0].shape[-1]
    C_total = Cin + growth * num_layers
    Hp, Wp = H + 2, W + 2          # spatial plane with a 1-pixel zero halo
    S = Hp * Wp                    # flattened padded plane (lane axis length)
    # Flat index range covering every interior pixel: interior flat indices
    # run from Wp+1 (pixel (1,1)) to H*Wp+W (pixel (H,W)).
    span = (H - 1) * Wp + W

    # ---- parameter / input packing (tiny XLA ops, no transposes of x) ------
    # x zero-padded spatially (== SAME padding halo) and flattened, NCHW order.
    x_pad = jnp.pad(x_nchw, ((0, 0), (0, 0), (1, 1), (1, 1))).reshape(B, Cin, S)

    # Dense conv weights: HWIO (3,3,c_in_l,g) -> (9, g, c_in_l) bf16,
    # one channel-major MXU LHS per tap (tap index t = ky*3 + kx).
    wd = [jnp.transpose(w.reshape(9, w.shape[2], growth), (0, 2, 1))
              .astype(jnp.bfloat16) for w in dense_ws]
    bd = [b.reshape(growth, 1).astype(jnp.float32) for b in dense_bs]
    wl_t = jnp.transpose(w_lff).astype(jnp.bfloat16)        # (Cin, C_total)
    bl = b_lff.reshape(Cin, 1).astype(jnp.float32)          # (Cin, 1)

    # Column mask over the [Wp+1, Wp+1+span) output window: 1.0 at interior
    # columns, 0.0 at the left/right halo columns interleaved in the flat
    # layout (keeps the halo of appended feature channels exactly zero).
    cols = (jnp.arange(span, dtype=jnp.int32) + (Wp + 1)) % Wp
    mask = ((cols >= 1) & (cols <= W)).astype(jnp.float32).reshape(1, span)

    def kernel(*refs):
        x_ref, mask_ref = refs[0], refs[1]
        wd_refs = refs[2:2 + num_layers]
        bd_refs = refs[2 + num_layers:2 + 2 * num_layers]
        wl_ref = refs[2 + 2 * num_layers]
        bl_ref = refs[3 + 2 * num_layers]
        out_ref = refs[4 + 2 * num_layers]
        feat_ref = refs[5 + 2 * num_layers]

        # Seed the scratch.  Channels [0, Cin): padded input (halo already
        # zero).  Channels [Cin, C_total): zero the whole slab so their halo
        # (head/tail rows + masked columns) is zero and no stale data leaks
        # across grid steps / cores (done every step -> megacore-safe).
        feat_ref[0:Cin, :] = x_ref[...].astype(jnp.bfloat16)
        feat_ref[Cin:C_total, :] = jnp.zeros((C_total - Cin, S), jnp.bfloat16)

        col_mask = mask_ref[...]                          # (1, span) f32

        # Dense layers: 9 accumulated channel-major matmuls per layer.  Each
        # tap's RHS is a lane-shifted slice of the padded flat feature slab;
        # the zero halo reproduces SAME zero-padding exactly.
        for l in range(num_layers):
            c_in = Cin + growth * l
            w_l = wd_refs[l]                              # (9, growth, c_in)
            acc = None
            for ky in range(3):
                for kx in range(3):
                    start = ky * Wp + kx
                    rhs = feat_ref[0:c_in, start:start + span]    # bf16
                    d = jnp.dot(w_l[ky * 3 + kx], rhs,
                                preferred_element_type=jnp.float32)
                    acc = d if acc is None else acc + d
            y = jnp.maximum(acc + bd_refs[l][...], 0.0) * col_mask
            feat_ref[c_in:c_in + growth, Wp + 1:Wp + 1 + span] = (
                y.astype(jnp.bfloat16))

        # Local feature fusion (1x1 conv) + residual, computed directly in the
        # lane-dense (Cin, S) orientation: no transpose, no interior gather.
        y = jnp.dot(wl_ref[...], feat_ref[...],
                    preferred_element_type=jnp.float32)   # (Cin, S) f32
        out_ref[...] = x_ref[...] + y + bl_ref[...]

    in_specs = [
        pl.BlockSpec((None, Cin, S), lambda b: (b, 0, 0)),    # x (padded flat)
        pl.BlockSpec((1, span), lambda b: (0, 0)),            # column mask
    ]
    # Weights / biases: constant index maps -> VMEM-resident across the grid.
    in_specs += [pl.BlockSpec(w.shape, lambda b: (0, 0, 0)) for w in wd]
    in_specs += [pl.BlockSpec(b_.shape, lambda b: (0, 0)) for b_ in bd]
    in_specs += [pl.BlockSpec(wl_t.shape, lambda b: (0, 0)),
                 pl.BlockSpec(bl.shape, lambda b: (0, 0))]

    out_pad = pl.pallas_call(
        kernel,
        out_shape=jax.ShapeDtypeStruct((B, Cin, S), jnp.float32),
        grid=(B,),
        in_specs=in_specs,
        out_specs=pl.BlockSpec((None, Cin, S), lambda b: (b, 0, 0)),
        scratch_shapes=[pltpu.VMEM((C_total, S), jnp.bfloat16)],
        compiler_params=pltpu.CompilerParams(
            dimension_semantics=("parallel",),
            vmem_limit_bytes=32 * 1024 * 1024),
    )(x_pad, mask, *wd, *bd, wl_t, bl)

    # Interior slice of the padded plane -> NCHW.  Plain XLA slice; no
    # transpose anywhere on the output path.
    return out_pad.reshape(B, Cin, Hp, Wp)[:, :, 1:H + 1, 1:W + 1]


def rdb_reference(x_nchw, dense_ws, dense_bs, w_lff, b_lff):
    """Pure-JAX NCHW reference, mirrors the PyTorch module exactly."""
    feat = x_nchw
    for w, b in zip(dense_ws, dense_bs):
        y = jax.lax.conv_general_dilated(
            feat, w, window_strides=(1, 1), padding="SAME",
            dimension_numbers=("NCHW", "HWIO", "NCHW"),
            precision=jax.lax.Precision.HIGHEST) + b[None, :, None, None]
        feat = jnp.concatenate([feat, jnp.maximum(y, 0.0)], axis=1)
    y = jnp.einsum("bchw,co->bohw", feat, w_lff,
                   precision=jax.lax.Precision.HIGHEST) + b_lff[None, :, None, None]
    return x_nchw + y


if __name__ == "__main__":
    B, Cin, H, W = 2, 4, 16, 16            # x is NCHW (2, 4, 16, 16), like PyTorch
    growth, num_layers = 4, 3
    C_total = Cin + growth * num_layers

    key = jax.random.PRNGKey(0)
    keys = jax.random.split(key, 3 + 2 * num_layers)

    x_nchw = jax.random.normal(keys[0], (B, Cin, H, W), jnp.float32)

    # Deterministic synthetic parameters (shapes implied by the module __init__).
    dense_ws, dense_bs = [], []
    for l in range(num_layers):
        c_in_l = Cin + growth * l
        dense_ws.append(0.1 * jax.random.normal(
            keys[1 + 2 * l], (3, 3, c_in_l, growth), jnp.float32))   # HWIO
        dense_bs.append(0.1 * jax.random.normal(
            keys[2 + 2 * l], (growth,), jnp.float32))
    w_lff = 0.1 * jax.random.normal(keys[-2], (C_total, Cin), jnp.float32)
    b_lff = 0.1 * jax.random.normal(keys[-1], (Cin,), jnp.float32)

    out_nchw = residual_dense_block(x_nchw, dense_ws, dense_bs, w_lff, b_lff)
    jax.block_until_ready(out_nchw)

    # Correctness check against a pure-JAX f32 reference.  The kernel keeps
    # activations + MXU operands in bf16 (f32 accumulation, f32 residual), so
    # allow a bf16-level tolerance.
    ref_nchw = rdb_reference(x_nchw, dense_ws, dense_bs, w_lff, b_lff)
    max_err = float(jnp.max(jnp.abs(out_nchw - ref_nchw)))
    assert max_err < 3e-2, f"max abs error too large: {max_err}"

    print("KERNEL_OK")
</pallas_src>

<mosaic_0001>
module attributes {stable_mosaic.version = 11 : i64} {
  func.func @kernel(%arg0: i32, %arg1: memref<1x4x324xf32, #tpu.memory_space<vmem>>, %arg2: memref<1x286xf32, #tpu.memory_space<vmem>>, %arg3: memref<9x4x4xbf16, #tpu.memory_space<vmem>>, %arg4: memref<9x4x8xbf16, #tpu.memory_space<vmem>>, %arg5: memref<9x4x12xbf16, #tpu.memory_space<vmem>>, %arg6: memref<4x1xf32, #tpu.memory_space<vmem>>, %arg7: memref<4x1xf32, #tpu.memory_space<vmem>>, %arg8: memref<4x1xf32, #tpu.memory_space<vmem>>, %arg9: memref<4x16xbf16, #tpu.memory_space<vmem>>, %arg10: memref<4x1xf32, #tpu.memory_space<vmem>>, %arg11: memref<1x4x324xf32, #tpu.memory_space<vmem>>, %arg12: memref<16x324xbf16, #tpu.memory_space<vmem>>) attributes {dimension_semantics = [#tpu.dimension_semantics<parallel>], iteration_bounds = array<i64: 2>, scalar_prefetch = 0 : i64, scratch_operands = 1 : i64, tpu.core_type = #tpu.core_type<tc>, window_params = [{transform_indices = @transform_0, window_bounds = array<i64: 1, 4, 324>}, {pipeline_mode = #tpu.pipeline_mode<synchronous>, transform_indices = @transform_1, window_bounds = array<i64: 1, 286>}, {pipeline_mode = #tpu.pipeline_mode<synchronous>, transform_indices = @transform_2, window_bounds = array<i64: 9, 4, 4>}, {pipeline_mode = #tpu.pipeline_mode<synchronous>, transform_indices = @transform_3, window_bounds = array<i64: 9, 4, 8>}, {pipeline_mode = #tpu.pipeline_mode<synchronous>, transform_indices = @transform_4, window_bounds = array<i64: 9, 4, 12>}, {pipeline_mode = #tpu.pipeline_mode<synchronous>, transform_indices = @transform_5, window_bounds = array<i64: 4, 1>}, {pipeline_mode = #tpu.pipeline_mode<synchronous>, transform_indices = @transform_6, window_bounds = array<i64: 4, 1>}, {pipeline_mode = #tpu.pipeline_mode<synchronous>, transform_indices = @transform_7, window_bounds = array<i64: 4, 1>}, {pipeline_mode = #tpu.pipeline_mode<synchronous>, transform_indices = @transform_8, window_bounds = array<i64: 4, 16>}, {pipeline_mode = #tpu.pipeline_mode<synchronous>, transform_indices = @transform_9, window_bounds = array<i64: 4, 1>}, {transform_indices = @transform_10, window_bounds = array<i64: 1, 4, 324>}]} {
    %c0 = arith.constant 0 : index
    %c0_0 = arith.constant 0 : index
    %c0_1 = arith.constant 0 : index
    %0 = vector.load %arg1[%c0, %c0_0, %c0_1] : memref<1x4x324xf32, #tpu.memory_space<vmem>>, vector<1x4x324xf32>
    %1 = vector.shape_cast %0 : vector<1x4x324xf32> to vector<4x324xf32>
    %2 = arith.truncf %1 : vector<4x324xf32> to vector<4x324xbf16>
    %c0_2 = arith.constant 0 : index
    %c0_3 = arith.constant 0 : index
    %3 = vector.load %arg12[%c0_2, %c0_3] : memref<16x324xbf16, #tpu.memory_space<vmem>>, vector<4x324xbf16>
    tpu.vector_store %arg12[%c0_2, %c0_3], %2 {strides = array<i32>} : memref<16x324xbf16, #tpu.memory_space<vmem>>, vector<4x324xbf16>,
    %cst = arith.constant 0.000000e+00 : bf16
    %4 = vector.broadcast %cst : bf16 to vector<12x324xbf16>
    %c4 = arith.constant 4 : index
    %c0_4 = arith.constant 0 : index
    %5 = vector.load %arg12[%c4, %c0_4] : memref<16x324xbf16, #tpu.memory_space<vmem>>, vector<12x324xbf16>
    tpu.vector_store %arg12[%c4, %c0_4], %4 {strides = array<i32>} : memref<16x324xbf16, #tpu.memory_space<vmem>>, vector<12x324xbf16>,
    %c0_5 = arith.constant 0 : index
    %c0_6 = arith.constant 0 : index
    %6 = vector.load %arg2[%c0_5, %c0_6] : memref<1x286xf32, #tpu.memory_space<vmem>>, vector<1x286xf32>
    %c0_7 = arith.constant 0 : index
    %c0_8 = arith.constant 0 : index
    %7 = vector.load %arg12[%c0_7, %c0_8] : memref<16x324xbf16, #tpu.memory_space<vmem>>, vector<4x286xbf16>
    %c0_9 = arith.constant 0 : index
    %c0_10 = arith.constant 0 : index
    %c0_11 = arith.constant 0 : index
    %8 = vector.load %arg3[%c0_9, %c0_10, %c0_11] : memref<9x4x4xbf16, #tpu.memory_space<vmem>>, vector<1x4x4xbf16>
    %9 = vector.shape_cast %8 : vector<1x4x4xbf16> to vector<4x4xbf16>
    %cst_12 = arith.constant dense<0.000000e+00> : vector<4x286xf32>
    %10 = tpu.matmul %9, %7, %cst_12 {dimension_numbers = #tpu.dot_dimension_numbers<[1], [0], [0], [1], [0, 0, 1, 1], [], []>} : vector<4x4xbf16>, vector<4x286xbf16>, vector<4x286xf32> -> vector<4x286xf32>
    %c0_13 = arith.constant 0 : index
    %c1 = arith.constant 1 : index
    %11 = vector.load %arg12[%c0_13, %c1] : memref<16x324xbf16, #tpu.memory_space<vmem>>, vector<4x286xbf16>
    %c1_14 = arith.constant 1 : index
    %c0_15 = arith.constant 0 : index
    %c0_16 = arith.constant 0 : index
    %12 = vector.load %arg3[%c1_14, %c0_15, %c0_16] : memref<9x4x4xbf16, #tpu.memory_space<vmem>>, vector<1x4x4xbf16>
    %13 = vector.shape_cast %12 : vector<1x4x4xbf16> to vector<4x4xbf16>
    %cst_17 = arith.constant dense<0.000000e+00> : vector<4x286xf32>
    %14 = tpu.matmul %13, %11, %cst_17 {dimension_numbers = #tpu.dot_dimension_numbers<[1], [0], [0], [1], [0, 0, 1, 1], [], []>} : vector<4x4xbf16>, vector<4x286xbf16>, vector<4x286xf32> -> vector<4x286xf32>
    %15 = arith.addf %10, %14 : vector<4x286xf32>
    %c0_18 = arith.constant 0 : index
    %c2 = arith.constant 2 : index
    %16 = vector.load %arg12[%c0_18, %c2] : memref<16x324xbf16, #tpu.memory_space<vmem>>, vector<4x286xbf16>
    %c2_19 = arith.constant 2 : index
    %c0_20 = arith.constant 0 : index
    %c0_21 = arith.constant 0 : index
    %17 = vector.load %arg3[%c2_19, %c0_20, %c0_21] : memref<9x4x4xbf16, #tpu.memory_space<vmem>>, vector<1x4x4xbf16>
    %18 = vector.shape_cast %17 : vector<1x4x4xbf16> to vector<4x4xbf16>
    %cst_22 = arith.constant dense<0.000000e+00> : vector<4x286xf32>
    %19 = tpu.matmul %18, %16, %cst_22 {dimension_numbers = #tpu.dot_dimension_numbers<[1], [0], [0], [1], [0, 0, 1, 1], [], []>} : vector<4x4xbf16>, vector<4x286xbf16>, vector<4x286xf32> -> vector<4x286xf32>
    %20 = arith.addf %15, %19 : vector<4x286xf32>
    %c0_23 = arith.constant 0 : index
    %c18 = arith.constant 18 : index
    %21 = vector.load %arg12[%c0_23, %c18] : memref<16x324xbf16, #tpu.memory_space<vmem>>, vector<4x286xbf16>
    %c3 = arith.constant 3 : index
    %c0_24 = arith.constant 0 : index
    %c0_25 = arith.constant 0 : index
    %22 = vector.load %arg3[%c3, %c0_24, %c0_25] : memref<9x4x4xbf16, #tpu.memory_space<vmem>>, vector<1x4x4xbf16>
    %23 = vector.shape_cast %22 : vector<1x4x4xbf16> to vector<4x4xbf16>
    %cst_26 = arith.constant dense<0.000000e+00> : vector<4x286xf32>
    %24 = tpu.matmul %23, %21, %cst_26 {dimension_numbers = #tpu.dot_dimension_numbers<[1], [0], [0], [1], [0, 0, 1, 1], [], []>} : vector<4x4xbf16>, vector<4x286xbf16>, vector<4x286xf32> -> vector<4x286xf32>
    %25 = arith.addf %20, %24 : vector<4x286xf32>
    %c0_27 = arith.constant 0 : index
    %c19 = arith.constant 19 : index
    %26 = vector.load %arg12[%c0_27, %c19] : memref<16x324xbf16, #tpu.memory_space<vmem>>, vector<4x286xbf16>
    %c4_28 = arith.constant 4 : index
    %c0_29 = arith.constant 0 : index
    %c0_30 = arith.constant 0 : index
    %27 = vector.load %arg3[%c4_28, %c0_29, %c0_30] : memref<9x4x4xbf16, #tpu.memory_space<vmem>>, vector<1x4x4xbf16>
    %28 = vector.shape_cast %27 : vector<1x4x4xbf16> to vector<4x4xbf16>
    %cst_31 = arith.constant dense<0.000000e+00> : vector<4x286xf32>
    %29 = tpu.matmul %28, %26, %cst_31 {dimension_numbers = #tpu.dot_dimension_numbers<[1], [0], [0], [1], [0, 0, 1, 1], [], []>} : vector<4x4xbf16>, vector<4x286xbf16>, vector<4x286xf32> -> vector<4x286xf32>
    %30 = arith.addf %25, %29 : vector<4x286xf32>
    %c0_32 = arith.constant 0 : index
    %c20 = arith.constant 20 : index
    %31 = vector.load %arg12[%c0_32, %c20] : memref<16x324xbf16, #tpu.memory_space<vmem>>, vector<4x286xbf16>
    %c5 = arith.constant 5 : index
    %c0_33 = arith.constant 0 : index
    %c0_34 = arith.constant 0 : index
    %32 = vector.load %arg3[%c5, %c0_33, %c0_34] : memref<9x4x4xbf16, #tpu.memory_space<vmem>>, vector<1x4x4xbf16>
    %33 = vector.shape_cast %32 : vector<1x4x4xbf16> to vector<4x4xbf16>
    %cst_35 = arith.constant dense<0.000000e+00> : vector<4x286xf32>
    %34 = tpu.matmul %33, %31, %cst_35 {dimension_numbers = #tpu.dot_dimension_numbers<[1], [0], [0], [1], [0, 0, 1, 1], [], []>} : vector<4x4xbf16>, vector<4x286xbf16>, vector<4x286xf32> -> vector<4x286xf32>
    %35 = arith.addf %30, %34 : vector<4x286xf32>
    %c0_36 = arith.constant 0 : index
    %c36 = arith.constant 36 : index
    %36 = vector.load %arg12[%c0_36, %c36] : memref<16x324xbf16, #tpu.memory_space<vmem>>, vector<4x286xbf16>
    %c6 = arith.constant 6 : index
    %c0_37 = arith.constant 0 : index
    %c0_38 = arith.constant 0 : index
    %37 = vector.load %arg3[%c6, %c0_37, %c0_38] : memref<9x4x4xbf16, #tpu.memory_space<vmem>>, vector<1x4x4xbf16>
    %38 = vector.shape_cast %37 : vector<1x4x4xbf16> to vector<4x4xbf16>
    %cst_39 = arith.constant dense<0.000000e+00> : vector<4x286xf32>
    %39 = tpu.matmul %38, %36, %cst_39 {dimension_numbers = #tpu.dot_dimension_numbers<[1], [0], [0], [1], [0, 0, 1, 1], [], []>} : vector<4x4xbf16>, vector<4x286xbf16>, vector<4x286xf32> -> vector<4x286xf32>
    %40 = arith.addf %35, %39 : vector<4x286xf32>
    %c0_40 = arith.constant 0 : index
    %c37 = arith.constant 37 : index
    %41 = vector.load %arg12[%c0_40, %c37] : memref<16x324xbf16, #tpu.memory_space<vmem>>, vector<4x286xbf16>
    %c7 = arith.constant 7 : index
    %c0_41 = arith.constant 0 : index
    %c0_42 = arith.constant 0 : index
    %42 = vector.load %arg3[%c7, %c0_41, %c0_42] : memref<9x4x4xbf16, #tpu.memory_space<vmem>>, vector<1x4x4xbf16>
    %43 = vector.shape_cast %42 : vector<1x4x4xbf16> to vector<4x4xbf16>
    %cst_43 = arith.constant dense<0.000000e+00> : vector<4x286xf32>
    %44 = tpu.matmul %43, %41, %cst_43 {dimension_numbers = #tpu.dot_dimension_numbers<[1], [0], [0], [1], [0, 0, 1, 1], [], []>} : vector<4x4xbf16>, vector<4x286xbf16>, vector<4x286xf32> -> vector<4x286xf32>
    %45 = arith.addf %40, %44 : vector<4x286xf32>
    %c0_44 = arith.constant 0 : index
    %c38 = arith.constant 38 : index
    %46 = vector.load %arg12[%c0_44, %c38] : memref<16x324xbf16, #tpu.memory_space<vmem>>, vector<4x286xbf16>
    %c8 = arith.constant 8 : index
    %c0_45 = arith.constant 0 : index
    %c0_46 = arith.constant 0 : index
    %47 = vector.load %arg3[%c8, %c0_45, %c0_46] : memref<9x4x4xbf16, #tpu.memory_space<vmem>>, vector<1x4x4xbf16>
    %48 = vector.shape_cast %47 : vector<1x4x4xbf16> to vector<4x4xbf16>
    %cst_47 = arith.constant dense<0.000000e+00> : vector<4x286xf32>
    %49 = tpu.matmul %48, %46, %cst_47 {dimension_numbers = #tpu.dot_dimension_numbers<[1], [0], [0], [1], [0, 0, 1, 1], [], []>} : vector<4x4xbf16>, vector<4x286xbf16>, vector<4x286xf32> -> vector<4x286xf32>
    %50 = arith.addf %45, %49 : vector<4x286xf32>
    %c0_48 = arith.constant 0 : index
    %c0_49 = arith.constant 0 : index
    %51 = vector.load %arg6[%c0_48, %c0_49] : memref<4x1xf32, #tpu.memory_space<vmem>>, vector<4x1xf32>
    %52 = vector.broadcast %51 : vector<4x1xf32> to vector<4x286xf32>
    %53 = arith.addf %50, %52 : vector<4x286xf32>
    %cst_50 = arith.constant 0.000000e+00 : f32
    %54 = vector.broadcast %cst_50 : f32 to vector<4x286xf32>
    %55 = arith.maximumf %53, %54 : vector<4x286xf32>
    %56 = vector.broadcast %6 : vector<1x286xf32> to vector<4x286xf32>
    %57 = arith.mulf %55, %56 : vector<4x286xf32>
    %58 = arith.truncf %57 : vector<4x286xf32> to vector<4x286xbf16>
    %c4_51 = arith.constant 4 : index
    %c19_52 = arith.constant 19 : index
    %59 = vector.load %arg12[%c4_51, %c19_52] : memref<16x324xbf16, #tpu.memory_space<vmem>>, vector<4x286xbf16>
    tpu.vector_store %arg12[%c4_51, %c19_52], %58 {strides = array<i32>} : memref<16x324xbf16, #tpu.memory_space<vmem>>, vector<4x286xbf16>,
    %c0_53 = arith.constant 0 : index
    %c0_54 = arith.constant 0 : index
    %60 = vector.load %arg12[%c0_53, %c0_54] : memref<16x324xbf16, #tpu.memory_space<vmem>>, vector<8x286xbf16>
    %c0_55 = arith.constant 0 : index
    %c0_56 = arith.constant 0 : index
    %c0_57 = arith.constant 0 : index
    %61 = vector.load %arg4[%c0_55, %c0_56, %c0_57] : memref<9x4x8xbf16, #tpu.memory_space<vmem>>, vector<1x4x8xbf16>
    %62 = vector.shape_cast %61 : vector<1x4x8xbf16> to vector<4x8xbf16>
    %cst_58 = arith.constant dense<0.000000e+00> : vector<4x286xf32>
    %63 = tpu.matmul %62, %60, %cst_58 {dimension_numbers = #tpu.dot_dimension_numbers<[1], [0], [0], [1], [0, 0, 1, 1], [], []>} : vector<4x8xbf16>, vector<8x286xbf16>, vector<4x286xf32> -> vector<4x286xf32>
    %c0_59 = arith.constant 0 : index
    %c1_60 = arith.constant 1 : index
    %64 = vector.load %arg12[%c0_59, %c1_60] : memref<16x324xbf16, #tpu.memory_space<vmem>>, vector<8x286xbf16>
    %c1_61 = arith.constant 1 : index
    %c0_62 = arith.constant 0 : index
    %c0_63 = arith.constant 0 : index
    %65 = vector.load %arg4[%c1_61, %c0_62, %c0_63] : memref<9x4x8xbf16, #tpu.memory_space<vmem>>, vector<1x4x8xbf16>
    %66 = vector.shape_cast %65 : vector<1x4x8xbf16> to vector<4x8xbf16>
    %cst_64 = arith.constant dense<0.000000e+00> : vector<4x286xf32>
    %67 = tpu.matmul %66, %64, %cst_64 {dimension_numbers = #tpu.dot_dimension_numbers<[1], [0], [0], [1], [0, 0, 1, 1], [], []>} : vector<4x8xbf16>, vector<8x286xbf16>, vector<4x286xf32> -> vector<4x286xf32>
    %68 = arith.addf %63, %67 : vector<4x286xf32>
    %c0_65 = arith.constant 0 : index
    %c2_66 = arith.constant 2 : index
    %69 = vector.load %arg12[%c0_65, %c2_66] : memref<16x324xbf16, #tpu.memory_space<vmem>>, vector<8x286xbf16>
    %c2_67 = arith.constant 2 : index
    %c0_68 = arith.constant 0 : index
    %c0_69 = arith.constant 0 : index
    %70 = vector.load %arg4[%c2_67, %c0_68, %c0_69] : memref<9x4x8xbf16, #tpu.memory_space<vmem>>, vector<1x4x8xbf16>
    %71 = vector.shape_cast %70 : vector<1x4x8xbf16> to vector<4x8xbf16>
    %cst_70 = arith.constant dense<0.000000e+00> : vector<4x286xf32>
    %72 = tpu.matmul %71, %69, %cst_70 {dimension_numbers = #tpu.dot_dimension_numbers<[1], [0], [0], [1], [0, 0, 1, 1], [], []>} : vector<4x8xbf16>, vector<8x286xbf16>, vector<4x286xf32> -> vector<4x286xf32>
    %73 = arith.addf %68, %72 : vector<4x286xf32>
    %c0_71 = arith.constant 0 : index
    %c18_72 = arith.constant 18 : index
    %74 = vector.load %arg12[%c0_71, %c18_72] : memref<16x324xbf16, #tpu.memory_space<vmem>>, vector<8x286xbf16>
    %c3_73 = arith.constant 3 : index
    %c0_74 = arith.constant 0 : index
    %c0_75 = arith.constant 0 : index
    %75 = vector.load %arg4[%c3_73, %c0_74, %c0_75] : memref<9x4x8xbf16, #tpu.memory_space<vmem>>, vector<1x4x8xbf16>
    %76 = vector.shape_cast %75 : vector<1x4x8xbf16> to vector<4x8xbf16>
    %cst_76 = arith.constant dense<0.000000e+00> : vector<4x286xf32>
    %77 = tpu.matmul %76, %74, %cst_76 {dimension_numbers = #tpu.dot_dimension_numbers<[1], [0], [0], [1], [0, 0, 1, 1], [], []>} : vector<4x8xbf16>, vector<8x286xbf16>, vector<4x286xf32> -> vector<4x286xf32>
    %78 = arith.addf %73, %77 : vector<4x286xf32>
    %c0_77 = arith.constant 0 : index
    %c19_78 = arith.constant 19 : index
    %79 = vector.load %arg12[%c0_77, %c19_78] : memref<16x324xbf16, #tpu.memory_space<vmem>>, vector<8x286xbf16>
    %c4_79 = arith.constant 4 : index
    %c0_80 = arith.constant 0 : index
    %c0_81 = arith.constant 0 : index
    %80 = vector.load %arg4[%c4_79, %c0_80, %c0_81] : memref<9x4x8xbf16, #tpu.memory_space<vmem>>, vector<1x4x8xbf16>
    %81 = vector.shape_cast %80 : vector<1x4x8xbf16> to vector<4x8xbf16>
    %cst_82 = arith.constant dense<0.000000e+00> : vector<4x286xf32>
    %82 = tpu.matmul %81, %79, %cst_82 {dimension_numbers = #tpu.dot_dimension_numbers<[1], [0], [0], [1], [0, 0, 1, 1], [], []>} : vector<4x8xbf16>, vector<8x286xbf16>, vector<4x286xf32> -> vector<4x286xf32>
    %83 = arith.addf %78, %82 : vector<4x286xf32>
    %c0_83 = arith.constant 0 : index
    %c20_84 = arith.constant 20 : index
    %84 = vector.load %arg12[%c0_83, %c20_84] : memref<16x324xbf16, #tpu.memory_space<vmem>>, vector<8x286xbf16>
    %c5_85 = arith.constant 5 : index
    %c0_86 = arith.constant 0 : index
    %c0_87 = arith.constant 0 : index
    %85 = vector.load %arg4[%c5_85, %c0_86, %c0_87] : memref<9x4x8xbf16, #tpu.memory_space<vmem>>, vector<1x4x8xbf16>
    %86 = vector.shape_cast %85 : vector<1x4x8xbf16> to vector<4x8xbf16>
    %cst_88 = arith.constant dense<0.000000e+00> : vector<4x286xf32>
    %87 = tpu.matmul %86, %84, %cst_88 {dimension_numbers = #tpu.dot_dimension_numbers<[1], [0], [0], [1], [0, 0, 1, 1], [], []>} : vector<4x8xbf16>, vector<8x286xbf16>, vector<4x286xf32> -> vector<4x286xf32>
    %88 = arith.addf %83, %87 : vector<4x286xf32>
    %c0_89 = arith.constant 0 : index
    %c36_90 = arith.constant 36 : index
    %89 = vector.load %arg12[%c0_89, %c36_90] : memref<16x324xbf16, #tpu.memory_space<vmem>>, vector<8x286xbf16>
    %c6_91 = arith.constant 6 : index
    %c0_92 = arith.constant 0 : index
    %c0_93 = arith.constant 0 : index
    %90 = vector.load %arg4[%c6_91, %c0_92, %c0_93] : memref<9x4x8xbf16, #tpu.memory_space<vmem>>, vector<1x4x8xbf16>
    %91 = vector.shape_cast %90 : vector<1x4x8xbf16> to vector<4x8xbf16>
    %cst_94 = arith.constant dense<0.000000e+00> : vector<4x286xf32>
    %92 = tpu.matmul %91, %89, %cst_94 {dimension_numbers = #tpu.dot_dimension_numbers<[1], [0], [0], [1], [0, 0, 1, 1], [], []>} : vector<4x8xbf16>, vector<8x286xbf16>, vector<4x286xf32> -> vector<4x286xf32>
    %93 = arith.addf %88, %92 : vector<4x286xf32>
    %c0_95 = arith.constant 0 : index
    %c37_96 = arith.constant 37 : index
    %94 = vector.load %arg12[%c0_95, %c37_96] : memref<16x324xbf16, #tpu.memory_space<vmem>>, vector<8x286xbf16>
    %c7_97 = arith.constant 7 : index
    %c0_98 = arith.constant 0 : index
    %c0_99 = arith.constant 0 : index
    %95 = vector.load %arg4[%c7_97, %c0_98, %c0_99] : memref<9x4x8xbf16, #tpu.memory_space<vmem>>, vector<1x4x8xbf16>
    %96 = vector.shape_cast %95 : vector<1x4x8xbf16> to vector<4x8xbf16>
    %cst_100 = arith.constant dense<0.000000e+00> : vector<4x286xf32>
    %97 = tpu.matmul %96, %94, %cst_100 {dimension_numbers = #tpu.dot_dimension_numbers<[1], [0], [0], [1], [0, 0, 1, 1], [], []>} : vector<4x8xbf16>, vector<8x286xbf16>, vector<4x286xf32> -> vector<4x286xf32>
    %98 = arith.addf %93, %97 : vector<4x286xf32>
    %c0_101 = arith.constant 0 : index
    %c38_102 = arith.constant 38 : index
    %99 = vector.load %arg12[%c0_101, %c38_102] : memref<16x324xbf16, #tpu.memory_space<vmem>>, vector<8x286xbf16>
    %c8_103 = arith.constant 8 : index
    %c0_104 = arith.constant 0 : index
    %c0_105 = arith.constant 0 : index
    %100 = vector.load %arg4[%c8_103, %c0_104, %c0_105] : memref<9x4x8xbf16, #tpu.memory_space<vmem>>, vector<1x4x8xbf16>
    %101 = vector.shape_cast %100 : vector<1x4x8xbf16> to vector<4x8xbf16>
    %cst_106 = arith.constant dense<0.000000e+00> : vector<4x286xf32>
    %102 = tpu.matmul %101, %99, %cst_106 {dimension_numbers = #tpu.dot_dimension_numbers<[1], [0], [0], [1], [0, 0, 1, 1], [], []>} : vector<4x8xbf16>, vector<8x286xbf16>, vector<4x286xf32> -> vector<4x286xf32>
    %103 = arith.addf %98, %102 : vector<4x286xf32>
    %c0_107 = arith.constant 0 : index
    %c0_108 = arith.constant 0 : index
    %104 = vector.load %arg7[%c0_107, %c0_108] : memref<4x1xf32, #tpu.memory_space<vmem>>, vector<4x1xf32>
    %105 = vector.broadcast %104 : vector<4x1xf32> to vector<4x286xf32>
    %106 = arith.addf %103, %105 : vector<4x286xf32>
    %cst_109 = arith.constant 0.000000e+00 : f32
    %107 = vector.broadcast %cst_109 : f32 to vector<4x286xf32>
    %108 = arith.maximumf %106, %107 : vector<4x286xf32>
    %109 = vector.broadcast %6 : vector<1x286xf32> to vector<4x286xf32>
    %110 = arith.mulf %108, %109 : vector<4x286xf32>
    %111 = arith.truncf %110 : vector<4x286xf32> to vector<4x286xbf16>
    %c8_110 = arith.constant 8 : index
    %c19_111 = arith.constant 19 : index
    %112 = vector.load %arg12[%c8_110, %c19_111] : memref<16x324xbf16, #tpu.memory_space<vmem>>, vector<4x286xbf16>
    tpu.vector_store %arg12[%c8_110, %c19_111], %111 {strides = array<i32>} : memref<16x324xbf16, #tpu.memory_space<vmem>>, vector<4x286xbf16>,
    %c0_112 = arith.constant 0 : index
    %c0_113 = arith.constant 0 : index
    %113 = vector.load %arg12[%c0_112, %c0_113] : memref<16x324xbf16, #tpu.memory_space<vmem>>, vector<12x286xbf16>
    %c0_114 = arith.constant 0 : index
    %c0_115 = arith.constant 0 : index
    %c0_116 = arith.constant 0 : index
    %114 = vector.load %arg5[%c0_114, %c0_115, %c0_116] : memref<9x4x12xbf16, #tpu.memory_space<vmem>>, vector<1x4x12xbf16>
    %115 = vector.shape_cast %114 : vector<1x4x12xbf16> to vector<4x12xbf16>
    %cst_117 = arith.constant dense<0.000000e+00> : vector<4x286xf32>
    %116 = tpu.matmul %115, %113, %cst_117 {dimension_numbers = #tpu.dot_dimension_numbers<[1], [0], [0], [1], [0, 0, 1, 1], [], []>} : vector<4x12xbf16>, vector<12x286xbf16>, vector<4x286xf32> -> vector<4x286xf32>
    %c0_118 = arith.constant 0 : index
    %c1_119 = arith.constant 1 : index
    %117 = vector.load %arg12[%c0_118, %c1_119] : memref<16x324xbf16, #tpu.memory_space<vmem>>, vector<12x286xbf16>
    %c1_120 = arith.constant 1 : index
    %c0_121 = arith.constant 0 : index
    %c0_122 = arith.constant 0 : index
    %118 = vector.load %arg5[%c1_120, %c0_121, %c0_122] : memref<9x4x12xbf16, #tpu.memory_space<vmem>>, vector<1x4x12xbf16>
    %119 = vector.shape_cast %118 : vector<1x4x12xbf16> to vector<4x12xbf16>
    %cst_123 = arith.constant dense<0.000000e+00> : vector<4x286xf32>
    %120 = tpu.matmul %119, %117, %cst_123 {dimension_numbers = #tpu.dot_dimension_numbers<[1], [0], [0], [1], [0, 0, 1, 1], [], []>} : vector<4x12xbf16>, vector<12x286xbf16>, vector<4x286xf32> -> vector<4x286xf32>
    %121 = arith.addf %116, %120 : vector<4x286xf32>
    %c0_124 = arith.constant 0 : index
    %c2_125 = arith.constant 2 : index
    %122 = vector.load %arg12[%c0_124, %c2_125] : memref<16x324xbf16, #tpu.memory_space<vmem>>, vector<12x286xbf16>
    %c2_126 = arith.constant 2 : index
    %c0_127 = arith.constant 0 : index
    %c0_128 = arith.constant 0 : index
    %123 = vector.load %arg5[%c2_126, %c0_127, %c0_128] : memref<9x4x12xbf16, #tpu.memory_space<vmem>>, vector<1x4x12xbf16>
    %124 = vector.shape_cast %123 : vector<1x4x12xbf16> to vector<4x12xbf16>
    %cst_129 = arith.constant dense<0.000000e+00> : vector<4x286xf32>
    %125 = tpu.matmul %124, %122, %cst_129 {dimension_numbers = #tpu.dot_dimension_numbers<[1], [0], [0], [1], [0, 0, 1, 1], [], []>} : vector<4x12xbf16>, vector<12x286xbf16>, vector<4x286xf32> -> vector<4x286xf32>
    %126 = arith.addf %121, %125 : vector<4x286xf32>
    %c0_130 = arith.constant 0 : index
    %c18_131 = arith.constant 18 : index
    %127 = vector.load %arg12[%c0_130, %c18_131] : memref<16x324xbf16, #tpu.memory_space<vmem>>, vector<12x286xbf16>
    %c3_132 = arith.constant 3 : index
    %c0_133 = arith.constant 0 : index
    %c0_134 = arith.constant 0 : index
    %128 = vector.load %arg5[%c3_132, %c0_133, %c0_134] : memref<9x4x12xbf16, #tpu.memory_space<vmem>>, vector<1x4x12xbf16>
    %129 = vector.shape_cast %128 : vector<1x4x12xbf16> to vector<4x12xbf16>
    %cst_135 = arith.constant dense<0.000000e+00> : vector<4x286xf32>
    %130 = tpu.matmul %129, %127, %cst_135 {dimension_numbers = #tpu.dot_dimension_numbers<[1], [0], [0], [1], [0, 0, 1, 1], [], []>} : vector<4x12xbf16>, vector<12x286xbf16>, vector<4x286xf32> -> vector<4x286xf32>
    %131 = arith.addf %126, %130 : vector<4x286xf32>
    %c0_136 = arith.constant 0 : index
    %c19_137 = arith.constant 19 : index
    %132 = vector.load %arg12[%c0_136, %c19_137] : memref<16x324xbf16, #tpu.memory_space<vmem>>, vector<12x286xbf16>
    %c4_138 = arith.constant 4 : index
    %c0_139 = arith.constant 0 : index
    %c0_140 = arith.constant 0 : index
    %133 = vector.load %arg5[%c4_138, %c0_139, %c0_140] : memref<9x4x12xbf16, #tpu.memory_space<vmem>>, vector<1x4x12xbf16>
    %134 = vector.shape_cast %133 : vector<1x4x12xbf16> to vector<4x12xbf16>
    %cst_141 = arith.constant dense<0.000000e+00> : vector<4x286xf32>
    %135 = tpu.matmul %134, %132, %cst_141 {dimension_numbers = #tpu.dot_dimension_numbers<[1], [0], [0], [1], [0, 0, 1, 1], [], []>} : vector<4x12xbf16>, vector<12x286xbf16>, vector<4x286xf32> -> vector<4x286xf32>
    %136 = arith.addf %131, %135 : vector<4x286xf32>
    %c0_142 = arith.constant 0 : index
    %c20_143 = arith.constant 20 : index
    %137 = vector.load %arg12[%c0_142, %c20_143] : memref<16x324xbf16, #tpu.memory_space<vmem>>, vector<12x286xbf16>
    %c5_144 = arith.constant 5 : index
    %c0_145 = arith.constant 0 : index
    %c0_146 = arith.constant 0 : index
    %138 = vector.load %arg5[%c5_144, %c0_145, %c0_146] : memref<9x4x12xbf16, #tpu.memory_space<vmem>>, vector<1x4x12xbf16>
    %139 = vector.shape_cast %138 : vector<1x4x12xbf16> to vector<4x12xbf16>
    %cst_147 = arith.constant dense<0.000000e+00> : vector<4x286xf32>
    %140 = tpu.matmul %139, %137, %cst_147 {dimension_numbers = #tpu.dot_dimension_numbers<[1], [0], [0], [1], [0, 0, 1, 1], [], []>} : vector<4x12xbf16>, vector<12x286xbf16>, vector<4x286xf32> -> vector<4x286xf32>
    %141 = arith.addf %136, %140 : vector<4x286xf32>
    %c0_148 = arith.constant 0 : index
    %c36_149 = arith.constant 36 : index
    %142 = vector.load %arg12[%c0_148, %c36_149] : memref<16x324xbf16, #tpu.memory_space<vmem>>, vector<12x286xbf16>
    %c6_150 = arith.constant 6 : index
    %c0_151 = arith.constant 0 : index
    %c0_152 = arith.constant 0 : index
    %143 = vector.load %arg5[%c6_150, %c0_151, %c0_152] : memref<9x4x12xbf16, #tpu.memory_space<vmem>>, vector<1x4x12xbf16>
    %144 = vector.shape_cast %143 : vector<1x4x12xbf16> to vector<4x12xbf16>
    %cst_153 = arith.constant dense<0.000000e+00> : vector<4x286xf32>
    %145 = tpu.matmul %144, %142, %cst_153 {dimension_numbers = #tpu.dot_dimension_numbers<[1], [0], [0], [1], [0, 0, 1, 1], [], []>} : vector<4x12xbf16>, vector<12x286xbf16>, vector<4x286xf32> -> vector<4x286xf32>
    %146 = arith.addf %141, %145 : vector<4x286xf32>
    %c0_154 = arith.constant 0 : index
    %c37_155 = arith.constant 37 : index
    %147 = vector.load %arg12[%c0_154, %c37_155] : memref<16x324xbf16, #tpu.memory_space<vmem>>, vector<12x286xbf16>
    %c7_156 = arith.constant 7 : index
    %c0_157 = arith.constant 0 : index
    %c0_158 = arith.constant 0 : index
    %148 = vector.load %arg5[%c7_156, %c0_157, %c0_158] : memref<9x4x12xbf16, #tpu.memory_space<vmem>>, vector<1x4x12xbf16>
    %149 = vector.shape_cast %148 : vector<1x4x12xbf16> to vector<4x12xbf16>
    %cst_159 = arith.constant dense<0.000000e+00> : vector<4x286xf32>
    %150 = tpu.matmul %149, %147, %cst_159 {dimension_numbers = #tpu.dot_dimension_numbers<[1], [0], [0], [1], [0, 0, 1, 1], [], []>} : vector<4x12xbf16>, vector<12x286xbf16>, vector<4x286xf32> -> vector<4x286xf32>
    %151 = arith.addf %146, %150 : vector<4x286xf32>
    %c0_160 = arith.constant 0 : index
    %c38_161 = arith.constant 38 : index
    %152 = vector.load %arg12[%c0_160, %c38_161] : memref<16x324xbf16, #tpu.memory_space<vmem>>, vector<12x286xbf16>
    %c8_162 = arith.constant 8 : index
    %c0_163 = arith.constant 0 : index
    %c0_164 = arith.constant 0 : index
    %153 = vector.load %arg5[%c8_162, %c0_163, %c0_164] : memref<9x4x12xbf16, #tpu.memory_space<vmem>>, vector<1x4x12xbf16>
    %154 = vector.shape_cast %153 : vector<1x4x12xbf16> to vector<4x12xbf16>
    %cst_165 = arith.constant dense<0.000000e+00> : vector<4x286xf32>
    %155 = tpu.matmul %154, %152, %cst_165 {dimension_numbers = #tpu.dot_dimension_numbers<[1], [0], [0], [1], [0, 0, 1, 1], [], []>} : vector<4x12xbf16>, vector<12x286xbf16>, vector<4x286xf32> -> vector<4x286xf32>
    %156 = arith.addf %151, %155 : vector<4x286xf32>
    %c0_166 = arith.constant 0 : index
    %c0_167 = arith.constant 0 : index
    %157 = vector.load %arg8[%c0_166, %c0_167] : memref<4x1xf32, #tpu.memory_space<vmem>>, vector<4x1xf32>
    %158 = vector.broadcast %157 : vector<4x1xf32> to vector<4x286xf32>
    %159 = arith.addf %156, %158 : vector<4x286xf32>
    %cst_168 = arith.constant 0.000000e+00 : f32
    %160 = vector.broadcast %cst_168 : f32 to vector<4x286xf32>
    %161 = arith.maximumf %159, %160 : vector<4x286xf32>
    %162 = vector.broadcast %6 : vector<1x286xf32> to vector<4x286xf32>
    %163 = arith.mulf %161, %162 : vector<4x286xf32>
    %164 = arith.truncf %163 : vector<4x286xf32> to vector<4x286xbf16>
    %c12 = arith.constant 12 : index
    %c19_169 = arith.constant 19 : index
    %165 = vector.load %arg12[%c12, %c19_169] : memref<16x324xbf16, #tpu.memory_space<vmem>>, vector<4x286xbf16>
    tpu.vector_store %arg12[%c12, %c19_169], %164 {strides = array<i32>} : memref<16x324xbf16, #tpu.memory_space<vmem>>, vector<4x286xbf16>,
    %c0_170 = arith.constant 0 : index
    %c0_171 = arith.constant 0 : index
    %166 = vector.load %arg9[%c0_170, %c0_171] : memref<4x16xbf16, #tpu.memory_space<vmem>>, vector<4x16xbf16>
    %c0_172 = arith.constant 0 : index
    %c0_173 = arith.constant 0 : index
    %167 = vector.load %arg12[%c0_172, %c0_173] : memref<16x324xbf16, #tpu.memory_space<vmem>>, vector<16x324xbf16>
    %cst_174 = arith.constant dense<0.000000e+00> : vector<4x324xf32>
    %168 = tpu.matmul %166, %167, %cst_174 {dimension_numbers = #tpu.dot_dimension_numbers<[1], [0], [0], [1], [0, 0, 1, 1], [], []>} : vector<4x16xbf16>, vector<16x324xbf16>, vector<4x324xf32> -> vector<4x324xf32>
    %c0_175 = arith.constant 0 : index
    %c0_176 = arith.constant 0 : index
    %c0_177 = arith.constant 0 : index
    %169 = vector.load %arg1[%c0_175, %c0_176, %c0_177] : memref<1x4x324xf32, #tpu.memory_space<vmem>>, vector<1x4x324xf32>
    %170 = vector.shape_cast %169 : vector<1x4x324xf32> to vector<4x324xf32>
    %171 = arith.addf %170, %168 : vector<4x324xf32>
    %c0_178 = arith.constant 0 : index
    %c0_179 = arith.constant 0 : index
    %172 = vector.load %arg10[%c0_178, %c0_179] : memref<4x1xf32, #tpu.memory_space<vmem>>, vector<4x1xf32>
    %173 = vector.broadcast %172 : vector<4x1xf32> to vector<4x324xf32>
    %174 = arith.addf %171, %173 : vector<4x324xf32>
    %c0_180 = arith.constant 0 : index
    %c0_181 = arith.constant 0 : index
    %c0_182 = arith.constant 0 : index
    %175 = vector.load %arg11[%c0_180, %c0_181, %c0_182] : memref<1x4x324xf32, #tpu.memory_space<vmem>>, vector<1x4x324xf32>
    %176 = vector.shape_cast %175 : vector<1x4x324xf32> to vector<4x324xf32>
    %177 = vector.shape_cast %174 : vector<4x324xf32> to vector<1x4x324xf32>
    tpu.vector_store %arg11[%c0_180, %c0_181, %c0_182], %177 {strides = array<i32>} : memref<1x4x324xf32, #tpu.memory_space<vmem>>, vector<1x4x324xf32>,
    return
  }
  func.func @transform_0(%arg0: i32) -> (i32, i32, i32) {
    %c0_i32 = arith.constant 0 : i32
    %c0_i32_0 = arith.constant 0 : i32
    %c0_i32_1 = arith.constant 0 : i32
    return %arg0, %c0_i32, %c0_i32_0 : i32, i32, i32
  }
  func.func @transform_1(%arg0: i32) -> (i32, i32) {
    %c0_i32 = arith.constant 0 : i32
    %c0_i32_0 = arith.constant 0 : i32
    %c0_i32_1 = arith.constant 0 : i32
    return %c0_i32, %c0_i32_0 : i32, i32
  }
  func.func @transform_2(%arg0: i32) -> (i32, i32, i32) {
    %c0_i32 = arith.constant 0 : i32
    %c0_i32_0 = arith.constant 0 : i32
    %c0_i32_1 = arith.constant 0 : i32
    %c0_i32_2 = arith.constant 0 : i32
    return %c0_i32, %c0_i32_0, %c0_i32_1 : i32, i32, i32
  }
  func.func @transform_3(%arg0: i32) -> (i32, i32, i32) {
    %c0_i32 = arith.constant 0 : i32
    %c0_i32_0 = arith.constant 0 : i32
    %c0_i32_1 = arith.constant 0 : i32
    %c0_i32_2 = arith.constant 0 : i32
    return %c0_i32, %c0_i32_0, %c0_i32_1 : i32, i32, i32
  }
  func.func @transform_4(%arg0: i32) -> (i32, i32, i32) {
    %c0_i32 = arith.constant 0 : i32
    %c0_i32_0 = arith.constant 0 : i32
    %c0_i32_1 = arith.constant 0 : i32
    %c0_i32_2 = arith.constant 0 : i32
    return %c0_i32, %c0_i32_0, %c0_i32_1 : i32, i32, i32
  }
  func.func @transform_5(%arg0: i32) -> (i32, i32) {
    %c0_i32 = arith.constant 0 : i32
    %c0_i32_0 = arith.constant 0 : i32
    %c0_i32_1 = arith.constant 0 : i32
    return %c0_i32, %c0_i32_0 : i32, i32
  }
  func.func @transform_6(%arg0: i32) -> (i32, i32) {
    %c0_i32 = arith.constant 0 : i32
    %c0_i32_0 = arith.constant 0 : i32
    %c0_i32_1 = arith.constant 0 : i32
    return %c0_i32, %c0_i32_0 : i32, i32
  }
  func.func @transform_7(%arg0: i32) -> (i32, i32) {
    %c0_i32 = arith.constant 0 : i32
    %c0_i32_0 = arith.constant 0 : i32
    %c0_i32_1 = arith.constant 0 : i32
    return %c0_i32, %c0_i32_0 : i32, i32
  }
  func.func @transform_8(%arg0: i32) -> (i32, i32) {
    %c0_i32 = arith.constant 0 : i32
    %c0_i32_0 = arith.constant 0 : i32
    %c0_i32_1 = arith.constant 0 : i32
    return %c0_i32, %c0_i32_0 : i32, i32
  }
  func.func @transform_9(%arg0: i32) -> (i32, i32) {
    %c0_i32 = arith.constant 0 : i32
    %c0_i32_0 = arith.constant 0 : i32
    %c0_i32_1 = arith.constant 0 : i32
    return %c0_i32, %c0_i32_0 : i32, i32
  }
  func.func @transform_10(%arg0: i32) -> (i32, i32, i32) {
    %c0_i32 = arith.constant 0 : i32
    %c0_i32_0 = arith.constant 0 : i32
    %c0_i32_1 = arith.constant 0 : i32
    return %arg0, %c0_i32, %c0_i32_0 : i32, i32, i32
  }
}

</mosaic_0001>

<llo_original>
// kernel: tpu_custom_call.1
$region0: #{tpu_custom_call.1}
  #allocation0 [shape = 'u32[]', space=smem, size = 0x4, offset = 0x4, fixed_abs, tag = 'smem constant byte address 0x4 - core index']
  #allocation1 [shape = 'u32[72,128]{1,0:T(1,128)}', space=vmem, size = 0x9000, scoped, tag = 'internal scratch']
  #allocation2 [shape = 'bf16[16,324]{1,0:T(8,128)(2,1)}', space=vmem, size = 0x3000, scoped, tag = 'scratch operand']
  %s0 = inlined_call_operand.vmem [shape: f32[2,4,324], index: 0, kind: input, shape index: {}]
  %s1 = inlined_call_operand.vmem [shape: f32[1,286], index: 1, kind: input, shape index: {}]
  %s2 = inlined_call_operand.vmem [shape: bf16[9,4,4], index: 2, kind: input, shape index: {}]
  %s3 = inlined_call_operand.vmem [shape: bf16[9,4,8], index: 3, kind: input, shape index: {}]
  %s4 = inlined_call_operand.vmem [shape: bf16[9,4,12], index: 4, kind: input, shape index: {}]
  %s5 = inlined_call_operand.vmem [shape: f32[4,1], index: 5, kind: input, shape index: {}]
  %s6 = inlined_call_operand.vmem [shape: f32[4,1], index: 6, kind: input, shape index: {}]
  %s7 = inlined_call_operand.vmem [shape: f32[4,1], index: 7, kind: input, shape index: {}]
  %s8 = inlined_call_operand.vmem [shape: bf16[4,16], index: 8, kind: input, shape index: {}]
  %s9 = inlined_call_operand.vmem [shape: f32[4,1], index: 9, kind: input, shape index: {}]
  %s10 = inlined_call_operand.hbm [shape: f32[2,4,324], index: 10, kind: output, shape index: {}]
  %s11 = sld [smem:[#allocation0]]
  $region73: #{tpu_custom_call.1} parent=0
    _
  %s13 = ssub.s32 1, %s11
  %s14 = scalar_select 0, %s13, %s11
  $region1: #{tpu_custom_call.1} parent=0
    #allocation3 [shape = 'u8[12288]{0}', space=vmem, size = 0x3000, scoped, tag = 'output window, operand 0']
    #allocation4 [shape = 's32[2]{0}', space=sflag, size = 0x8, scoped, tag = 'scoped memory for tpu_custom_call.1']
    %15 = vsyncpa [#allocation4], 0
    %s16 = scalar_lea.sflag [#allocation4], 1
    %17 = vsyncpa %s16, 0
    loop: start=0, step=1, limit=4
    $region2: #{tpu_custom_call.1} parent=1 // loop_pre_header
      _
    $region3: #{tpu_custom_call.1} parent=1 // loop_header
      %s19 = sphi 0, %s23
      %p20 = scmp.ge.s32.totalorder %s19, 4
      %s29 = sphi 0, %s31
      %s32 = sphi 0, %s29
      %s33 = sphi 0, %s32
      %s49 = sphi 0, %s33
      %s53 = sphi 0, %s53
      %s55 = sphi 0, %s53
      %s56 = sphi 0, %s55
      %s70 = sphi 0, %s56
      %s74 = sphi 0, %s74
      %s76 = sphi 0, %s74
      %s77 = sphi 0, %s76
      %s91 = sphi 0, %s77
      %s95 = sphi 0, %s95
      %s97 = sphi 0, %s95
      %s98 = sphi 0, %s97
      %s112 = sphi 0, %s98
      %s116 = sphi 0, %s116
      %s118 = sphi 0, %s116
      %s119 = sphi 0, %s118
      %s133 = sphi 0, %s119
      %s137 = sphi 0, %s137
      %s139 = sphi 0, %s137
      %s140 = sphi 0, %s139
      %s154 = sphi 0, %s140
      %s158 = sphi 0, %s158
      %s160 = sphi 0, %s158
      %s161 = sphi 0, %s160
      %s175 = sphi 0, %s161
      %s179 = sphi 0, %s179
      %s181 = sphi 0, %s179
      %s182 = sphi 0, %s181
      %s196 = sphi 0, %s182
      %s200 = sphi 0, %s200
      %s202 = sphi 0, %s200
      %s203 = sphi 0, %s202
      %s217 = sphi 0, %s203
      %s221 = sphi 0, %s221
      %s223 = sphi 0, %s221
      %s224 = sphi 0, %s223
      %s238 = sphi 0, %s224
      %s244 = sphi 0, %s246
      %s247 = sphi 0, %s244
      %s248 = sphi 0, %s247
      %s264 = sphi 0, %s248
    $region4: #{tpu_custom_call.1} parent=1 // loop_header_branch
      %22 = sbr.rel (%p20) target = $region8
    $region5: #{tpu_custom_call.1} parent=1 // loop_body
      %s24 = ssub.s32 %s19, 1
      %s25 = ssub.s32 %s19, 2
      %s26 = sadd.s32 %s19, 1
      %s27 = ssub.s32 %s19, %s26
      %p28 = scmp.eq.s32.totalorder %s27, 0
      %s30 = sadd.s32 %s29, 1
      %s31 = scalar_select %p28, %s29, %s30
      %p34 = pneg %p28
      %p35 = scmp.eq.s32.totalorder %s19, 1
      %p36 = por %p34, %p35
      %p37 = scmp.ne.s32.totalorder %s29, %s32
      %p38 = scmp.eq.s32.totalorder %s19, 0
      %p39 = por %p37, %p38
      %p40 = scmp.ne.s32.totalorder %s29, %s32
      %p41 = scmp.eq.s32.totalorder %s24, 1
      %p42 = por %p40, %p41
      %p43 = scmp.ne.s32.totalorder %s32, %s33
      %p44 = scmp.eq.s32.totalorder %s24, 0
      %p45 = por %p43, %p44
      %p46 = scmp.ne.s32.totalorder %s32, %s33
      %p47 = scmp.eq.s32.totalorder %s25, 1
      %p48 = por %p46, %p47
      %p50 = scmp.ne.s32.totalorder %s33, %s49
      %p51 = scmp.eq.s32.totalorder %s25, 0
      %p52 = por %p50, %p51
      %s54 = sadd.s32 %s53, 1
      %p57 = scmp.eq.s32.totalorder %s19, 1
      %p58 = scmp.ne.s32.totalorder %s53, %s55
      %p59 = scmp.eq.s32.totalorder %s19, 0
      %p60 = por %p58, %p59
      %p61 = scmp.ne.s32.totalorder %s53, %s55
      %p62 = scmp.eq.s32.totalorder %s24, 1
      %p63 = por %p61, %p62
      %p64 = scmp.ne.s32.totalorder %s55, %s56
      %p65 = scmp.eq.s32.totalorder %s24, 0
      %p66 = por %p64, %p65
      %p67 = scmp.ne.s32.totalorder %s55, %s56
      %p68 = scmp.eq.s32.totalorder %s25, 1
      %p69 = por %p67, %p68
      %p71 = scmp.ne.s32.totalorder %s56, %s70
      %p72 = scmp.eq.s32.totalorder %s25, 0
      %p73 = por %p71, %p72
      %s75 = sadd.s32 %s74, 1
      %p78 = scmp.eq.s32.totalorder %s19, 1
      %p79 = scmp.ne.s32.totalorder %s74, %s76
      %p80 = scmp.eq.s32.totalorder %s19, 0
      %p81 = por %p79, %p80
      %p82 = scmp.ne.s32.totalorder %s74, %s76
      %p83 = scmp.eq.s32.totalorder %s24, 1
      %p84 = por %p82, %p83
      %p85 = scmp.ne.s32.totalorder %s76, %s77
      %p86 = scmp.eq.s32.totalorder %s24, 0
      %p87 = por %p85, %p86
      %p88 = scmp.ne.s32.totalorder %s76, %s77
      %p89 = scmp.eq.s32.totalorder %s25, 1
      %p90 = por %p88, %p89
      %p92 = scmp.ne.s32.totalorder %s77, %s91
      %p93 = scmp.eq.s32.totalorder %s25, 0
      %p94 = por %p92, %p93
      %s96 = sadd.s32 %s95, 1
      %p99 = scmp.eq.s32.totalorder %s19, 1
      %p100 = scmp.ne.s32.totalorder %s95, %s97
      %p101 = scmp.eq.s32.totalorder %s19, 0
      %p102 = por %p100, %p101
      %p103 = scmp.ne.s32.totalorder %s95, %s97
      %p104 = scmp.eq.s32.totalorder %s24, 1
      %p105 = por %p103, %p104
      %p106 = scmp.ne.s32.totalorder %s97, %s98
      %p107 = scmp.eq.s32.totalorder %s24, 0
      %p108 = por %p106, %p107
      %p109 = scmp.ne.s32.totalorder %s97, %s98
      %p110 = scmp.eq.s32.totalorder %s25, 1
      %p111 = por %p109, %p110
      %p113 = scmp.ne.s32.totalorder %s98, %s112
      %p114 = scmp.eq.s32.totalorder %s25, 0
      %p115 = por %p113, %p114
      %s117 = sadd.s32 %s116, 1
      %p120 = scmp.eq.s32.totalorder %s19, 1
      %p121 = scmp.ne.s32.totalorder %s116, %s118
      %p122 = scmp.eq.s32.totalorder %s19, 0
      %p123 = por %p121, %p122
      %p124 = scmp.ne.s32.totalorder %s116, %s118
      %p125 = scmp.eq.s32.totalorder %s24, 1
      %p126 = por %p124, %p125
      %p127 = scmp.ne.s32.totalorder %s118, %s119
      %p128 = scmp.eq.s32.totalorder %s24, 0
      %p129 = por %p127, %p128
      %p130 = scmp.ne.s32.totalorder %s118, %s119
      %p131 = scmp.eq.s32.totalorder %s25, 1
      %p132 = por %p130, %p131
      %p134 = scmp.ne.s32.totalorder %s119, %s133
      %p135 = scmp.eq.s32.totalorder %s25, 0
      %p136 = por %p134, %p135
      %s138 = sadd.s32 %s137, 1
      %p141 = scmp.eq.s32.totalorder %s19, 1
      %p142 = scmp.ne.s32.totalorder %s137, %s139
      %p143 = scmp.eq.s32.totalorder %s19, 0
      %p144 = por %p142, %p143
      %p145 = scmp.ne.s32.totalorder %s137, %s139
      %p146 = scmp.eq.s32.totalorder %s24, 1
      %p147 = por %p145, %p146
      %p148 = scmp.ne.s32.totalorder %s139, %s140
      %p149 = scmp.eq.s32.totalorder %s24, 0
      %p150 = por %p148, %p149
      %p151 = scmp.ne.s32.totalorder %s139, %s140
      %p152 = scmp.eq.s32.totalorder %s25, 1
      %p153 = por %p151, %p152
      %p155 = scmp.ne.s32.totalorder %s140, %s154
      %p156 = scmp.eq.s32.totalorder %s25, 0
      %p157 = por %p155, %p156
      %s159 = sadd.s32 %s158, 1
      %p162 = scmp.eq.s32.totalorder %s19, 1
      %p163 = scmp.ne.s32.totalorder %s158, %s160
      %p164 = scmp.eq.s32.totalorder %s19, 0
      %p165 = por %p163, %p164
      %p166 = scmp.ne.s32.totalorder %s158, %s160
      %p167 = scmp.eq.s32.totalorder %s24, 1
      %p168 = por %p166, %p167
      %p169 = scmp.ne.s32.totalorder %s160, %s161
      %p170 = scmp.eq.s32.totalorder %s24, 0
      %p171 = por %p169, %p170
      %p172 = scmp.ne.s32.totalorder %s160, %s161
      %p173 = scmp.eq.s32.totalorder %s25, 1
      %p174 = por %p172, %p173
      %p176 = scmp.ne.s32.totalorder %s161, %s175
      %p177 = scmp.eq.s32.totalorder %s25, 0
      %p178 = por %p176, %p177
      %s180 = sadd.s32 %s179, 1
      %p183 = scmp.eq.s32.totalorder %s19, 1
      %p184 = scmp.ne.s32.totalorder %s179, %s181
      %p185 = scmp.eq.s32.totalorder %s19, 0
      %p186 = por %p184, %p185
      %p187 = scmp.ne.s32.totalorder %s179, %s181
      %p188 = scmp.eq.s32.totalorder %s24, 1
      %p189 = por %p187, %p188
      %p190 = scmp.ne.s32.totalorder %s181, %s182
      %p191 = scmp.eq.s32.totalorder %s24, 0
      %p192 = por %p190, %p191
      %p193 = scmp.ne.s32.totalorder %s181, %s182
      %p194 = scmp.eq.s32.totalorder %s25, 1
      %p195 = por %p193, %p194
      %p197 = scmp.ne.s32.totalorder %s182, %s196
      %p198 = scmp.eq.s32.totalorder %s25, 0
      %p199 = por %p197, %p198
      %s201 = sadd.s32 %s200, 1
      %p204 = scmp.eq.s32.totalorder %s19, 1
      %p205 = scmp.ne.s32.totalorder %s200, %s202
      %p206 = scmp.eq.s32.totalorder %s19, 0
      %p207 = por %p205, %p206
      %p208 = scmp.ne.s32.totalorder %s200, %s202
      %p209 = scmp.eq.s32.totalorder %s24, 1
      %p210 = por %p208, %p209
      %p211 = scmp.ne.s32.totalorder %s202, %s203
      %p212 = scmp.eq.s32.totalorder %s24, 0
      %p213 = por %p211, %p212
      %p214 = scmp.ne.s32.totalorder %s202, %s203
      %p215 = scmp.eq.s32.totalorder %s25, 1
      %p216 = por %p214, %p215
      %p218 = scmp.ne.s32.totalorder %s203, %s217
      %p219 = scmp.eq.s32.totalorder %s25, 0
      %p220 = por %p218, %p219
      %s222 = sadd.s32 %s221, 1
      %p225 = scmp.eq.s32.totalorder %s19, 1
      %p226 = scmp.ne.s32.totalorder %s221, %s223
      %p227 = scmp.eq.s32.totalorder %s19, 0
      %p228 = por %p226, %p227
      %p229 = scmp.ne.s32.totalorder %s221, %s223
      %p230 = scmp.eq.s32.totalorder %s24, 1
      %p231 = por %p229, %p230
      %p232 = scmp.ne.s32.totalorder %s223, %s224
      %p233 = scmp.eq.s32.totalorder %s24, 0
      %p234 = por %p232, %p233
      %p235 = scmp.ne.s32.totalorder %s223, %s224
      %p236 = scmp.eq.s32.totalorder %s25, 1
      %p237 = por %p235, %p236
      %p239 = scmp.ne.s32.totalorder %s224, %s238
      %p240 = scmp.eq.s32.totalorder %s25, 0
      %p241 = por %p239, %p240
      %s242 = ssub.s32 %s19, %s26
      %p243 = scmp.eq.s32.totalorder %s242, 0
      %s245 = sadd.s32 %s244, 1
      %s246 = scalar_select %p243, %s244, %s245
      %p249 = pneg %p243
      %p250 = scmp.eq.s32.totalorder %s19, 1
      %p251 = por %p249, %p250
      %p252 = scmp.ne.s32.totalorder %s244, %s247
      %p253 = scmp.eq.s32.totalorder %s19, 0
      %p254 = por %p252, %p253
      %p255 = scmp.ne.s32.totalorder %s244, %s247
      %p256 = scmp.eq.s32.totalorder %s24, 1
      %p257 = por %p255, %p256
      %p258 = scmp.ne.s32.totalorder %s247, %s248
      %p259 = scmp.eq.s32.totalorder %s24, 0
      %p260 = por %p258, %p259
      %p261 = scmp.ne.s32.totalorder %s247, %s248
      %p262 = scmp.eq.s32.totalorder %s25, 1
      %p263 = por %p261, %p262
      %p265 = scmp.ne.s32.totalorder %s248, %s264
      %p266 = scmp.eq.s32.totalorder %s25, 0
      %p267 = por %p265, %p266
      %p268 = scmp.le.s32.totalorder 1, %s19
      %p269 = scmp.lt.s32.totalorder %s19, 3
      %p270 = pnand %p268, %p269
      %p271 = pneg %p270
      // Predicated region
      $region9: #{tpu_custom_call.1} parent=5 // pred_check
        _
      $region10: #{tpu_custom_call.1} parent=5 // pred_check_branch
        %273 = sbr.rel (%p270) target = $region12
      $region11: #{tpu_custom_call.1} parent=5 // pred_region
        %s274 = ssub.s32 %s19, 1
        // Predicated region
        $region13: #{tpu_custom_call.1} parent=11 // pred_check
          %p275 = pneg %p66
        $region14: #{tpu_custom_call.1} parent=11 // pred_check_branch
          %277 = sbr.rel (%p275) target = $region16
        $region15: #{tpu_custom_call.1} parent=11 // pred_region
          _
        $region16: #{tpu_custom_call.1} parent=11 // pred_fallthru
          _
        // Predicated region
        $region17: #{tpu_custom_call.1} parent=11 // pred_check
          %p278 = pneg %p87
        $region18: #{tpu_custom_call.1} parent=11 // pred_check_branch
          %280 = sbr.rel (%p278) target = $region20
        $region19: #{tpu_custom_call.1} parent=11 // pred_region
          _
        $region20: #{tpu_custom_call.1} parent=11 // pred_fallthru
          _
        // Predicated region
        $region21: #{tpu_custom_call.1} parent=11 // pred_check
          %p281 = pneg %p108
        $region22: #{tpu_custom_call.1} parent=11 // pred_check_branch
          %283 = sbr.rel (%p281) target = $region24
        $region23: #{tpu_custom_call.1} parent=11 // pred_region
          _
        $region24: #{tpu_custom_call.1} parent=11 // pred_fallthru
          _
        // Predicated region
        $region25: #{tpu_custom_call.1} parent=11 // pred_check
          %p284 = pneg %p129
        $region26: #{tpu_custom_call.1} parent=11 // pred_check_branch
          %286 = sbr.rel (%p284) target = $region28
        $region27: #{tpu_custom_call.1} parent=11 // pred_region
          _
        $region28: #{tpu_custom_call.1} parent=11 // pred_fallthru
          _
        // Predicated region
        $region29: #{tpu_custom_call.1} parent=11 // pred_check
          %p287 = pneg %p150
        $region30: #{tpu_custom_call.1} parent=11 // pred_check_branch
          %289 = sbr.rel (%p287) target = $region32
        $region31: #{tpu_custom_call.1} parent=11 // pred_region
          _
        $region32: #{tpu_custom_call.1} parent=11 // pred_fallthru
          _
        // Predicated region
        $region33: #{tpu_custom_call.1} parent=11 // pred_check
          %p290 = pneg %p171
        $region34: #{tpu_custom_call.1} parent=11 // pred_check_branch
          %292 = sbr.rel (%p290) target = $region36
        $region35: #{tpu_custom_call.1} parent=11 // pred_region
          _
        $region36: #{tpu_custom_call.1} parent=11 // pred_fallthru
          _
        // Predicated region
        $region37: #{tpu_custom_call.1} parent=11 // pred_check
          %p293 = pneg %p192
        $region38: #{tpu_custom_call.1} parent=11 // pred_check_branch
          %295 = sbr.rel (%p293) target = $region40
        $region39: #{tpu_custom_call.1} parent=11 // pred_region
          _
        $region40: #{tpu_custom_call.1} parent=11 // pred_fallthru
          _
        // Predicated region
        $region41: #{tpu_custom_call.1} parent=11 // pred_check
          %p296 = pneg %p213
        $region42: #{tpu_custom_call.1} parent=11 // pred_check_branch
          %298 = sbr.rel (%p296) target = $region44
        $region43: #{tpu_custom_call.1} parent=11 // pred_region
          _
        $region44: #{tpu_custom_call.1} parent=11 // pred_fallthru
          _
        // Predicated region
        $region45: #{tpu_custom_call.1} parent=11 // pred_check
          %p299 = pneg %p234
        $region46: #{tpu_custom_call.1} parent=11 // pred_check_branch
          %301 = sbr.rel (%p299) target = $region48
        $region47: #{tpu_custom_call.1} parent=11 // pred_region
          _
        $region48: #{tpu_custom_call.1} parent=11 // pred_fallthru
          _
      $region12: #{tpu_custom_call.1} parent=5 // pred_fallthru
        _
      %p302 = scmp.lt.s32.totalorder %s19, 2
      // Predicated region
      $region49: #{tpu_custom_call.1} parent=5 // pred_check
        %p303 = pneg %p302
      $region50: #{tpu_custom_call.1} parent=5 // pred_check_branch
        %305 = sbr.rel (%p303) target = $region52
      $region51: #{tpu_custom_call.1} parent=5 // pred_region
        // Predicated region
        $region53: #{tpu_custom_call.1} parent=51 // pred_check
          %p306 = pneg %p39
        $region54: #{tpu_custom_call.1} parent=51 // pred_check_branch
          %308 = sbr.rel (%p306) target = $region56
        $region55: #{tpu_custom_call.1} parent=51 // pred_region
          %p309 = scmp.lt.s32.totalorder %s19, 1
          %s310 = scalar_select %p309, %s19, 1
          %s311 = smul.addr %s310, 3
          %s312 = smul.addr %s311, 4
          %s313 = scalar_lea.vmem %s0, %s312
        $region56: #{tpu_custom_call.1} parent=51 // pred_fallthru
          _
      $region52: #{tpu_custom_call.1} parent=5 // pred_fallthru
        _
      %p314 = scmp.le.s32.totalorder 1, %s19
      %p315 = scmp.lt.s32.totalorder %s19, 3
      %p316 = pnand %p314, %p315
      %p317 = pneg %p316
      // Predicated region
      $region57: #{tpu_custom_call.1} parent=5 // pred_check
        _
      $region58: #{tpu_custom_call.1} parent=5 // pred_check_branch
        %319 = sbr.rel (%p316) target = $region60
      $region59: #{tpu_custom_call.1} parent=5 // pred_region
        %s320 = ssub.s32 %s19, 1
        %p321 = scmp.lt.s32.totalorder %s24, 1
        %s322 = scalar_select %p321, %s24, 1
        %s323 = smul.addr %s322, 3
        %s324 = smul.addr %s323, 4
        %s325 = scalar_lea.vmem %s0, %s324
        %p326 = pneg %p45
        %p327 = pneg %p42
        %p328 = pneg %p66
        %p329 = pneg %p63
        %p330 = pneg %p87
        %p331 = pneg %p84
        %p332 = pneg %p108
        %p333 = pneg %p105
        %p334 = pneg %p129
        %p335 = pneg %p126
        %p336 = pneg %p150
        %p337 = pneg %p147
        %p338 = pneg %p171
        %p339 = pneg %p168
        %p340 = pneg %p192
        %p341 = pneg %p189
        %p342 = pneg %p213
        %p343 = pneg %p210
        %p344 = pneg %p234
        %p345 = pneg %p231
        %p346 = pneg %p260
        %p347 = pneg %p257
        %s348 = sand.u32 %s247, 1
        %s349 = scalar_lea.sflag [#allocation4], %s348
        %s350 = sand.u32 %s247, 1
        %s351 = smul.addr %s350, 12
        %s352 = scalar_lea.vmem [#allocation3], %s351
        %p353 = scmp.lt.s32.totalorder %s24, 1
        %s354 = scalar_select %p353, %s24, 1
        %s355 = smul.addr %s354, 3
        %s356 = smul.addr %s355, 4
        %s357 = scalar_lea.vmem %s0, %s356
        %v359 = vld [vmem:[%s357] sm:$0xff]
        %v360 = vld [vmem:[%s357 + $0x8] sm:$0xf]
        %363 = vst [vmem:[#allocation1] ss:$2 sm:$0xff] %v359
        %s364 = scalar_lea.vmem [#allocation1], 16
        %365 = vst [vmem:[%s364] ss:$2 sm:$0xff] %v360
        %v366 = vld.sshfl [vmem:[#allocation1] sm:$0xff pattern:$0x75316420]
        %v367 = vld.sshfl [vmem:[#allocation1 + $0x8] sm:$0xff pattern:$0x75316420]
        %v368 = vld.sshfl [vmem:[#allocation1 + $0x10] sm:$0xff pattern:$0x75316420]
        %v372 = vpack.c.bf16 %v367, %v366
        %v373 = vpack.c.bf16 %v368, %v368
        %374 = vst [vmem:[#allocation2] sm:$0x33] %v372
        %vm375 = vcmask 549888
        %376 = vst.msk [vmem:[#allocation2 + $0x8] sm:$0x3] %vm375, %v373
        %377 = vst [vmem:[#allocation2] sm:$0xcc] 0
        %vm378 = vcmask 551938
        %379 = vst.msk [vmem:[#allocation2 + $0x8] sm:$0xc] %vm378, 0
        %380 = vst [vmem:[#allocation2 + $0xc] sm:$0xff] 0
        %vm381 = vcmask 551936
        %382 = vst.msk [vmem:[#allocation2 + $0x14] sm:$0xf] %vm381, 0
        %v383 = vld [vmem:[%s1] sm:$0x7]
        %v384 = vld [vmem:[#allocation2] sm:$0x33]
        %v385 = vld [vmem:[#allocation2 + $0x8] sm:$0x3]
        %v386 = vld [vmem:[%s2] sm:$0x3]
        %s387 = scalar_lea.vmem %s2, 2
        %v388 = vld [vmem:[%s387] sm:$0x3]
        %v391 = vunpack.c.l.b16 %v384
        %v392 = vunpack.c.h.b16 %v384
        %v393 = vunpack.c.l.b16 %v385
        %v394 = vpack.c.b16 %v391, %v391
        %v395 = vpack.c.b16 %v392, %v392
        %v396 = vpack.c.b16 %v393, %v393
        %397 = vrot.lane.b32.xlu0 %v394, 127
        %v398 = vpop.permute.xlu0 %397
        %399 = vrot.lane.b32.xlu0 %v395, 127
        %v400 = vpop.permute.xlu0 %399
        %401 = vrot.lane.b32.xlu0 %v396, 127
        %v402 = vpop.permute.xlu0 %401
        %vm403 = vcmask 1039360
        %v404 = vsel %vm403, %v398, %v400
        %v405 = vsel %vm403, %v400, %v402
        %vm406 = vcmask 31744
        %v408 = vsel %vm406, %v388, 0
        %vm410 = vcmask 1041408
        %v412 = vsel %vm410, %v404, 0
        %v415 = vsel %vm410, %v405, 0
        %v418 = vsel %vm410, %v402, 0
        %420 = vmatpush.bf16.msra.mxu0 0
        %421 = vmatpush.bf16.msra.mxu0 0
        %422 = vmatpush.bf16.msra.mxu0 0
        %423 = vmatpush.bf16.msra.mxu0 0
        %424 = vmatpush.bf16.msra.mxu0 0
        %425 = vmatpush.bf16.msra.mxu0 0
        %426 = vmatpush.bf16.msra.mxu0 0
        %427 = vmatpush.bf16.msra.mxu0 %v412
        %428 = vmatmul.bf16.gmra.mxu0 %v408
        %v429 = vpop.f32.mrf.mxu0
        %v430 = vadd.f32 0.0, %v429
        %v431 = vpop.f32.mrf.mxu0
        %432 = vdwg.mxu0
        %433 = vmatpush.bf16.msra.mxu0 0
        %434 = vmatpush.bf16.msra.mxu0 0
        %435 = vmatpush.bf16.msra.mxu0 0
        %436 = vmatpush.bf16.msra.mxu0 0
        %437 = vmatpush.bf16.msra.mxu0 0
        %438 = vmatpush.bf16.msra.mxu0 0
        %439 = vmatpush.bf16.msra.mxu0 0
        %440 = vmatpush.bf16.msra.mxu0 %v415
        %441 = vmatmul.bf16.gmra.mxu0 %v408
        %v442 = vpop.f32.mrf.mxu0
        %v443 = vadd.f32 0.0, %v442
        %v444 = vpop.f32.mrf.mxu0
        %445 = vdwg.mxu0
        %446 = vmatpush.bf16.msra.mxu0 0
        %447 = vmatpush.bf16.msra.mxu0 0
        %448 = vmatpush.bf16.msra.mxu0 0
        %449 = vmatpush.bf16.msra.mxu0 0
        %450 = vmatpush.bf16.msra.mxu0 0
        %451 = vmatpush.bf16.msra.mxu0 0
        %452 = vmatpush.bf16.msra.mxu0 0
        %453 = vmatpush.bf16.msra.mxu0 %v418
        %454 = vmatmul.bf16.gmra.mxu0 %v408
        %v455 = vpop.f32.mrf.mxu0
        %v456 = vadd.f32 0.0, %v455
        %v457 = vpop.f32.mrf.mxu0
        %458 = vdwg.mxu0
        %v460 = vsel %vm406, %v386, 0
        %v463 = vsel %vm410, %v394, 0
        %v466 = vsel %vm410, %v395, 0
        %v469 = vsel %vm410, %v396, 0
        %471 = vmatpush.bf16.msra.mxu0 0
        %472 = vmatpush.bf16.msra.mxu0 0
        %473 = vmatpush.bf16.msra.mxu0 0
        %474 = vmatpush.bf16.msra.mxu0 0
        %475 = vmatpush.bf16.msra.mxu0 0
        %476 = vmatpush.bf16.msra.mxu0 0
        %477 = vmatpush.bf16.msra.mxu0 0
        %478 = vmatpush.bf16.msra.mxu0 %v463
        %479 = vmatmul.bf16.gmra.mxu0 %v460
        %v480 = vpop.f32.mrf.mxu0
        %v481 = vadd.f32 %v430, %v480
        %v482 = vpop.f32.mrf.mxu0
        %483 = vdwg.mxu0
        %484 = vmatpush.bf16.msra.mxu0 0
        %485 = vmatpush.bf16.msra.mxu0 0
        %486 = vmatpush.bf16.msra.mxu0 0
        %487 = vmatpush.bf16.msra.mxu0 0
        %488 = vmatpush.bf16.msra.mxu0 0
        %489 = vmatpush.bf16.msra.mxu0 0
        %490 = vmatpush.bf16.msra.mxu0 0
        %491 = vmatpush.bf16.msra.mxu0 %v466
        %492 = vmatmul.bf16.gmra.mxu0 %v460
        %v493 = vpop.f32.mrf.mxu0
        %v494 = vadd.f32 %v443, %v493
        %v495 = vpop.f32.mrf.mxu0
        %496 = vdwg.mxu0
        %497 = vmatpush.bf16.msra.mxu0 0
        %498 = vmatpush.bf16.msra.mxu0 0
        %499 = vmatpush.bf16.msra.mxu0 0
        %500 = vmatpush.bf16.msra.mxu0 0
        %501 = vmatpush.bf16.msra.mxu0 0
        %502 = vmatpush.bf16.msra.mxu0 0
        %503 = vmatpush.bf16.msra.mxu0 0
        %504 = vmatpush.bf16.msra.mxu0 %v469
        %505 = vmatmul.bf16.gmra.mxu0 %v460
        %v506 = vpop.f32.mrf.mxu0
        %v507 = vadd.f32 %v456, %v506
        %v508 = vpop.f32.mrf.mxu0
        %509 = vdwg.mxu0
        %s510 = scalar_lea.vmem %s2, 4
        %v511 = vld [vmem:[%s510] sm:$0x3]
        %512 = vrot.lane.b32.xlu0 %v394, 126
        %v513 = vpop.permute.xlu0 %512
        %514 = vrot.lane.b32.xlu0 %v395, 126
        %v515 = vpop.permute.xlu0 %514
        %516 = vrot.lane.b32.xlu0 %v396, 126
        %v517 = vpop.permute.xlu0 %516
        %vm518 = vcmask 1031168
        %v519 = vsel %vm518, %v513, %v515
        %v520 = vsel %vm518, %v515, %v517
        %v522 = vsel %vm406, %v511, 0
        %v525 = vsel %vm410, %v519, 0
        %v528 = vsel %vm410, %v520, 0
        %v531 = vsel %vm410, %v517, 0
        %533 = vmatpush.bf16.msra.mxu0 0
        %534 = vmatpush.bf16.msra.mxu0 0
        %535 = vmatpush.bf16.msra.mxu0 0
        %536 = vmatpush.bf16.msra.mxu0 0
        %537 = vmatpush.bf16.msra.mxu0 0
        %538 = vmatpush.bf16.msra.mxu0 0
        %539 = vmatpush.bf16.msra.mxu0 0
        %540 = vmatpush.bf16.msra.mxu0 %v525
        %541 = vmatmul.bf16.gmra.mxu0 %v522
        %v542 = vpop.f32.mrf.mxu0
        %v543 = vadd.f32 0.0, %v542
        %v544 = vpop.f32.mrf.mxu0
        %545 = vdwg.mxu0
        %546 = vmatpush.bf16.msra.mxu0 0
        %547 = vmatpush.bf16.msra.mxu0 0
        %548 = vmatpush.bf16.msra.mxu0 0
        %549 = vmatpush.bf16.msra.mxu0 0
        %550 = vmatpush.bf16.msra.mxu0 0
        %551 = vmatpush.bf16.msra.mxu0 0
        %552 = vmatpush.bf16.msra.mxu0 0
        %553 = vmatpush.bf16.msra.mxu0 %v528
        %554 = vmatmul.bf16.gmra.mxu0 %v522
        %v555 = vpop.f32.mrf.mxu0
        %v556 = vadd.f32 0.0, %v555
        %v557 = vpop.f32.mrf.mxu0
        %558 = vdwg.mxu0
        %559 = vmatpush.bf16.msra.mxu0 0
        %560 = vmatpush.bf16.msra.mxu0 0
        %561 = vmatpush.bf16.msra.mxu0 0
        %562 = vmatpush.bf16.msra.mxu0 0
        %563 = vmatpush.bf16.msra.mxu0 0
        %564 = vmatpush.bf16.msra.mxu0 0
        %565 = vmatpush.bf16.msra.mxu0 0
        %566 = vmatpush.bf16.msra.mxu0 %v531
        %567 = vmatmul.bf16.gmra.mxu0 %v522
        %v568 = vpop.f32.mrf.mxu0
        %v569 = vadd.f32 0.0, %v568
        %v570 = vpop.f32.mrf.mxu0
        %571 = vdwg.mxu0
        %v572 = vadd.f32 %v481, %v543
        %v573 = vadd.f32 %v494, %v556
        %v574 = vadd.f32 %v507, %v569
        %s575 = scalar_lea.vmem %s2, 6
        %v576 = vld [vmem:[%s575] sm:$0x3]
        %577 = vrot.lane.b32.xlu0 %v394, 110
        %v578 = vpop.permute.xlu0 %577
        %579 = vrot.lane.b32.xlu0 %v395, 110
        %v580 = vpop.permute.xlu0 %579
        %581 = vrot.lane.b32.xlu0 %v396, 110
        %v582 = vpop.permute.xlu0 %581
        %vm583 = vcmask 900096
        %v584 = vsel %vm583, %v578, %v580
        %v585 = vsel %vm583, %v580, %v582
        %v587 = vsel %vm406, %v576, 0
        %v590 = vsel %vm410, %v584, 0
        %v593 = vsel %vm410, %v585, 0
        %v596 = vsel %vm410, %v582, 0
        %598 = vmatpush.bf16.msra.mxu0 0
        %599 = vmatpush.bf16.msra.mxu0 0
        %600 = vmatpush.bf16.msra.mxu0 0
        %601 = vmatpush.bf16.msra.mxu0 0
        %602 = vmatpush.bf16.msra.mxu0 0
        %603 = vmatpush.bf16.msra.mxu0 0
        %604 = vmatpush.bf16.msra.mxu0 0
        %605 = vmatpush.bf16.msra.mxu0 %v590
        %606 = vmatmul.bf16.gmra.mxu0 %v587
        %v607 = vpop.f32.mrf.mxu0
        %v608 = vadd.f32 0.0, %v607
        %v609 = vpop.f32.mrf.mxu0
        %610 = vdwg.mxu0
        %611 = vmatpush.bf16.msra.mxu0 0
        %612 = vmatpush.bf16.msra.mxu0 0
        %613 = vmatpush.bf16.msra.mxu0 0
        %614 = vmatpush.bf16.msra.mxu0 0
        %615 = vmatpush.bf16.msra.mxu0 0
        %616 = vmatpush.bf16.msra.mxu0 0
        %617 = vmatpush.bf16.msra.mxu0 0
        %618 = vmatpush.bf16.msra.mxu0 %v593
        %619 = vmatmul.bf16.gmra.mxu0 %v587
        %v620 = vpop.f32.mrf.mxu0
        %v621 = vadd.f32 0.0, %v620
        %v622 = vpop.f32.mrf.mxu0
        %623 = vdwg.mxu0
        %624 = vmatpush.bf16.msra.mxu0 0
        %625 = vmatpush.bf16.msra.mxu0 0
        %626 = vmatpush.bf16.msra.mxu0 0
        %627 = vmatpush.bf16.msra.mxu0 0
        %628 = vmatpush.bf16.msra.mxu0 0
        %629 = vmatpush.bf16.msra.mxu0 0
        %630 = vmatpush.bf16.msra.mxu0 0
        %631 = vmatpush.bf16.msra.mxu0 %v596
        %632 = vmatmul.bf16.gmra.mxu0 %v587
        %v633 = vpop.f32.mrf.mxu0
        %v634 = vadd.f32 0.0, %v633
        %v635 = vpop.f32.mrf.mxu0
        %636 = vdwg.mxu0
        %v637 = vadd.f32 %v572, %v608
        %v638 = vadd.f32 %v573, %v621
        %v639 = vadd.f32 %v574, %v634
        %s640 = scalar_lea.vmem %s2, 8
        %v641 = vld [vmem:[%s640] sm:$0x3]
        %642 = vrot.lane.b32.xlu0 %v394, 109
        %v643 = vpop.permute.xlu0 %642
        %644 = vrot.lane.b32.xlu0 %v395, 109
        %v645 = vpop.permute.xlu0 %644
        %646 = vrot.lane.b32.xlu0 %v396, 109
        %v647 = vpop.permute.xlu0 %646
        %vm648 = vcmask 891904
        %v649 = vsel %vm648, %v643, %v645
        %v650 = vsel %vm648, %v645, %v647
        %v652 = vsel %vm406, %v641, 0
        %v655 = vsel %vm410, %v649, 0
        %v658 = vsel %vm410, %v650, 0
        %v661 = vsel %vm410, %v647, 0
        %663 = vmatpush.bf16.msra.mxu0 0
        %664 = vmatpush.bf16.msra.mxu0 0
        %665 = vmatpush.bf16.msra.mxu0 0
        %666 = vmatpush.bf16.msra.mxu0 0
        %667 = vmatpush.bf16.msra.mxu0 0
        %668 = vmatpush.bf16.msra.mxu0 0
        %669 = vmatpush.bf16.msra.mxu0 0
        %670 = vmatpush.bf16.msra.mxu0 %v655
        %671 = vmatmul.bf16.gmra.mxu0 %v652
        %v672 = vpop.f32.mrf.mxu0
        %v673 = vadd.f32 0.0, %v672
        %v674 = vpop.f32.mrf.mxu0
        %675 = vdwg.mxu0
        %676 = vmatpush.bf16.msra.mxu0 0
        %677 = vmatpush.bf16.msra.mxu0 0
        %678 = vmatpush.bf16.msra.mxu0 0
        %679 = vmatpush.bf16.msra.mxu0 0
        %680 = vmatpush.bf16.msra.mxu0 0
        %681 = vmatpush.bf16.msra.mxu0 0
        %682 = vmatpush.bf16.msra.mxu0 0
        %683 = vmatpush.bf16.msra.mxu0 %v658
        %684 = vmatmul.bf16.gmra.mxu0 %v652
        %v685 = vpop.f32.mrf.mxu0
        %v686 = vadd.f32 0.0, %v685
        %v687 = vpop.f32.mrf.mxu0
        %688 = vdwg.mxu0
        %689 = vmatpush.bf16.msra.mxu0 0
        %690 = vmatpush.bf16.msra.mxu0 0
        %691 = vmatpush.bf16.msra.mxu0 0
        %692 = vmatpush.bf16.msra.mxu0 0
        %693 = vmatpush.bf16.msra.mxu0 0
        %694 = vmatpush.bf16.msra.mxu0 0
        %695 = vmatpush.bf16.msra.mxu0 0
        %696 = vmatpush.bf16.msra.mxu0 %v661
        %697 = vmatmul.bf16.gmra.mxu0 %v652
        %v698 = vpop.f32.mrf.mxu0
        %v699 = vadd.f32 0.0, %v698
        %v700 = vpop.f32.mrf.mxu0
        %701 = vdwg.mxu0
        %v702 = vadd.f32 %v637, %v673
        %v703 = vadd.f32 %v638, %v686
        %v704 = vadd.f32 %v639, %v699
        %s705 = scalar_lea.vmem %s2, 10
        %v706 = vld [vmem:[%s705] sm:$0x3]
        %707 = vrot.lane.b32.xlu0 %v394, 108
        %v708 = vpop.permute.xlu0 %707
        %709 = vrot.lane.b32.xlu0 %v395, 108
        %v710 = vpop.permute.xlu0 %709
        %711 = vrot.lane.b32.xlu0 %v396, 108
        %v712 = vpop.permute.xlu0 %711
        %vm713 = vcmask 883712
        %v714 = vsel %vm713, %v708, %v710
        %v715 = vsel %vm713, %v710, %v712
        %v717 = vsel %vm406, %v706, 0
        %v720 = vsel %vm410, %v714, 0
        %v723 = vsel %vm410, %v715, 0
        %v726 = vsel %vm410, %v712, 0
        %728 = vmatpush.bf16.msra.mxu0 0
        %729 = vmatpush.bf16.msra.mxu0 0
        %730 = vmatpush.bf16.msra.mxu0 0
        %731 = vmatpush.bf16.msra.mxu0 0
        %732 = vmatpush.bf16.msra.mxu0 0
        %733 = vmatpush.bf16.msra.mxu0 0
        %734 = vmatpush.bf16.msra.mxu0 0
        %735 = vmatpush.bf16.msra.mxu0 %v720
        %736 = vmatmul.bf16.gmra.mxu0 %v717
        %v737 = vpop.f32.mrf.mxu0
        %v738 = vadd.f32 0.0, %v737
        %v739 = vpop.f32.mrf.mxu0
        %740 = vdwg.mxu0
        %741 = vmatpush.bf16.msra.mxu0 0
        %742 = vmatpush.bf16.msra.mxu0 0
        %743 = vmatpush.bf16.msra.mxu0 0
        %744 = vmatpush.bf16.msra.mxu0 0
        %745 = vmatpush.bf16.msra.mxu0 0
        %746 = vmatpush.bf16.msra.mxu0 0
        %747 = vmatpush.bf16.msra.mxu0 0
        %748 = vmatpush.bf16.msra.mxu0 %v723
        %749 = vmatmul.bf16.gmra.mxu0 %v717
        %v750 = vpop.f32.mrf.mxu0
        %v751 = vadd.f32 0.0, %v750
        %v752 = vpop.f32.mrf.mxu0
        %753 = vdwg.mxu0
        %754 = vmatpush.bf16.msra.mxu0 0
        %755 = vmatpush.bf16.msra.mxu0 0
        %756 = vmatpush.bf16.msra.mxu0 0
        %757 = vmatpush.bf16.msra.mxu0 0
        %758 = vmatpush.bf16.msra.mxu0 0
        %759 = vmatpush.bf16.msra.mxu0 0
        %760 = vmatpush.bf16.msra.mxu0 0
        %761 = vmatpush.bf16.msra.mxu0 %v726
        %762 = vmatmul.bf16.gmra.mxu0 %v717
        %v763 = vpop.f32.mrf.mxu0
        %v764 = vadd.f32 0.0, %v763
        %v765 = vpop.f32.mrf.mxu0
        %766 = vdwg.mxu0
        %v767 = vadd.f32 %v702, %v738
        %v768 = vadd.f32 %v703, %v751
        %v769 = vadd.f32 %v704, %v764
        %s770 = scalar_lea.vmem %s2, 12
        %v771 = vld [vmem:[%s770] sm:$0x3]
        %772 = vrot.lane.b32.xlu0 %v394, 92
        %v773 = vpop.permute.xlu0 %772
        %774 = vrot.lane.b32.xlu0 %v395, 92
        %v775 = vpop.permute.xlu0 %774
        %776 = vrot.lane.b32.xlu0 %v396, 92
        %v777 = vpop.permute.xlu0 %776
        %vm778 = vcmask 752640
        %v779 = vsel %vm778, %v773, %v775
        %v780 = vsel %vm778, %v775, %v777
        %v782 = vsel %vm406, %v771, 0
        %v785 = vsel %vm410, %v779, 0
        %v788 = vsel %vm410, %v780, 0
        %v791 = vsel %vm410, %v777, 0
        %793 = vmatpush.bf16.msra.mxu0 0
        %794 = vmatpush.bf16.msra.mxu0 0
        %795 = vmatpush.bf16.msra.mxu0 0
        %796 = vmatpush.bf16.msra.mxu0 0
        %797 = vmatpush.bf16.msra.mxu0 0
        %798 = vmatpush.bf16.msra.mxu0 0
        %799 = vmatpush.bf16.msra.mxu0 0
        %800 = vmatpush.bf16.msra.mxu0 %v785
        %801 = vmatmul.bf16.gmra.mxu0 %v782
        %v802 = vpop.f32.mrf.mxu0
        %v803 = vadd.f32 0.0, %v802
        %v804 = vpop.f32.mrf.mxu0
        %805 = vdwg.mxu0
        %806 = vmatpush.bf16.msra.mxu0 0
        %807 = vmatpush.bf16.msra.mxu0 0
        %808 = vmatpush.bf16.msra.mxu0 0
        %809 = vmatpush.bf16.msra.mxu0 0
        %810 = vmatpush.bf16.msra.mxu0 0
        %811 = vmatpush.bf16.msra.mxu0 0
        %812 = vmatpush.bf16.msra.mxu0 0
        %813 = vmatpush.bf16.msra.mxu0 %v788
        %814 = vmatmul.bf16.gmra.mxu0 %v782
        %v815 = vpop.f32.mrf.mxu0
        %v816 = vadd.f32 0.0, %v815
        %v817 = vpop.f32.mrf.mxu0
        %818 = vdwg.mxu0
        %819 = vmatpush.bf16.msra.mxu0 0
        %820 = vmatpush.bf16.msra.mxu0 0
        %821 = vmatpush.bf16.msra.mxu0 0
        %822 = vmatpush.bf16.msra.mxu0 0
        %823 = vmatpush.bf16.msra.mxu0 0
        %824 = vmatpush.bf16.msra.mxu0 0
        %825 = vmatpush.bf16.msra.mxu0 0
        %826 = vmatpush.bf16.msra.mxu0 %v791
        %827 = vmatmul.bf16.gmra.mxu0 %v782
        %v828 = vpop.f32.mrf.mxu0
        %v829 = vadd.f32 0.0, %v828
        %v830 = vpop.f32.mrf.mxu0
        %831 = vdwg.mxu0
        %v832 = vadd.f32 %v767, %v803
        %v833 = vadd.f32 %v768, %v816
        %v834 = vadd.f32 %v769, %v829
        %s835 = scalar_lea.vmem %s2, 14
        %v836 = vld [vmem:[%s835] sm:$0x3]
        %837 = vrot.lane.b32.xlu0 %v394, 91
        %v838 = vpop.permute.xlu0 %837
        %839 = vrot.lane.b32.xlu0 %v395, 91
        %v840 = vpop.permute.xlu0 %839
        %841 = vrot.lane.b32.xlu0 %v396, 91
        %v842 = vpop.permute.xlu0 %841
        %vm843 = vcmask 744448
        %v844 = vsel %vm843, %v838, %v840
        %v845 = vsel %vm843, %v840, %v842
        %v847 = vsel %vm406, %v836, 0
        %v850 = vsel %vm410, %v844, 0
        %v853 = vsel %vm410, %v845, 0
        %v856 = vsel %vm410, %v842, 0
        %858 = vmatpush.bf16.msra.mxu0 0
        %859 = vmatpush.bf16.msra.mxu0 0
        %860 = vmatpush.bf16.msra.mxu0 0
        %861 = vmatpush.bf16.msra.mxu0 0
        %862 = vmatpush.bf16.msra.mxu0 0
        %863 = vmatpush.bf16.msra.mxu0 0
        %864 = vmatpush.bf16.msra.mxu0 0
        %865 = vmatpush.bf16.msra.mxu0 %v850
        %866 = vmatmul.bf16.gmra.mxu0 %v847
        %v867 = vpop.f32.mrf.mxu0
        %v868 = vadd.f32 0.0, %v867
        %v869 = vpop.f32.mrf.mxu0
        %870 = vdwg.mxu0
        %871 = vmatpush.bf16.msra.mxu0 0
        %872 = vmatpush.bf16.msra.mxu0 0
        %873 = vmatpush.bf16.msra.mxu0 0
        %874 = vmatpush.bf16.msra.mxu0 0
        %875 = vmatpush.bf16.msra.mxu0 0
        %876 = vmatpush.bf16.msra.mxu0 0
        %877 = vmatpush.bf16.msra.mxu0 0
        %878 = vmatpush.bf16.msra.mxu0 %v853
        %879 = vmatmul.bf16.gmra.mxu0 %v847
        %v880 = vpop.f32.mrf.mxu0
        %v881 = vadd.f32 0.0, %v880
        %v882 = vpop.f32.mrf.mxu0
        %883 = vdwg.mxu0
        %884 = vmatpush.bf16.msra.mxu0 0
        %885 = vmatpush.bf16.msra.mxu0 0
        %886 = vmatpush.bf16.msra.mxu0 0
        %887 = vmatpush.bf16.msra.mxu0 0
        %888 = vmatpush.bf16.msra.mxu0 0
        %889 = vmatpush.bf16.msra.mxu0 0
        %890 = vmatpush.bf16.msra.mxu0 0
        %891 = vmatpush.bf16.msra.mxu0 %v856
        %892 = vmatmul.bf16.gmra.mxu0 %v847
        %v893 = vpop.f32.mrf.mxu0
        %v894 = vadd.f32 0.0, %v893
        %v895 = vpop.f32.mrf.mxu0
        %896 = vdwg.mxu0
        %v897 = vadd.f32 %v832, %v868
        %v898 = vadd.f32 %v833, %v881
        %v899 = vadd.f32 %v834, %v894
        %s900 = scalar_lea.vmem %s2, 16
        %v901 = vld [vmem:[%s900] sm:$0x3]
        %902 = vrot.lane.b32.xlu0 %v394, 90
        %v903 = vpop.permute.xlu0 %902
        %904 = vrot.lane.b32.xlu0 %v395, 90
        %v905 = vpop.permute.xlu0 %904
        %906 = vrot.lane.b32.xlu0 %v396, 90
        %v907 = vpop.permute.xlu0 %906
        %vm908 = vcmask 736256
        %v909 = vsel %vm908, %v903, %v905
        %v910 = vsel %vm908, %v905, %v907
        %v912 = vsel %vm406, %v901, 0
        %v915 = vsel %vm410, %v909, 0
        %v918 = vsel %vm410, %v910, 0
        %v921 = vsel %vm410, %v907, 0
        %923 = vmatpush.bf16.msra.mxu0 0
        %924 = vmatpush.bf16.msra.mxu0 0
        %925 = vmatpush.bf16.msra.mxu0 0
        %926 = vmatpush.bf16.msra.mxu0 0
        %927 = vmatpush.bf16.msra.mxu0 0
        %928 = vmatpush.bf16.msra.mxu0 0
        %929 = vmatpush.bf16.msra.mxu0 0
        %930 = vmatpush.bf16.msra.mxu0 %v915
        %931 = vmatmul.bf16.gmra.mxu0 %v912
        %v932 = vpop.f32.mrf.mxu0
        %v933 = vadd.f32 0.0, %v932
        %v934 = vpop.f32.mrf.mxu0
        %935 = vdwg.mxu0
        %936 = vmatpush.bf16.msra.mxu0 0
        %937 = vmatpush.bf16.msra.mxu0 0
        %938 = vmatpush.bf16.msra.mxu0 0
        %939 = vmatpush.bf16.msra.mxu0 0
        %940 = vmatpush.bf16.msra.mxu0 0
        %941 = vmatpush.bf16.msra.mxu0 0
        %942 = vmatpush.bf16.msra.mxu0 0
        %943 = vmatpush.bf16.msra.mxu0 %v918
        %944 = vmatmul.bf16.gmra.mxu0 %v912
        %v945 = vpop.f32.mrf.mxu0
        %v946 = vadd.f32 0.0, %v945
        %v947 = vpop.f32.mrf.mxu0
        %948 = vdwg.mxu0
        %949 = vmatpush.bf16.msra.mxu0 0
        %950 = vmatpush.bf16.msra.mxu0 0
        %951 = vmatpush.bf16.msra.mxu0 0
        %952 = vmatpush.bf16.msra.mxu0 0
        %953 = vmatpush.bf16.msra.mxu0 0
        %954 = vmatpush.bf16.msra.mxu0 0
        %955 = vmatpush.bf16.msra.mxu0 0
        %956 = vmatpush.bf16.msra.mxu0 %v921
        %957 = vmatmul.bf16.gmra.mxu0 %v912
        %v958 = vpop.f32.mrf.mxu0
        %v959 = vadd.f32 0.0, %v958
        %v960 = vpop.f32.mrf.mxu0
        %961 = vdwg.mxu0
        %v962 = vadd.f32 %v897, %v933
        %v963 = vadd.f32 %v898, %v946
        %v964 = vadd.f32 %v899, %v959
        %v965 = vld [vmem:[%s5] sm:$0xf]
        %967 = vset.pattern.permute.xlu0 0
        %968 = vperm.xlu0 %967, %v965
        %v969 = vpop.permute.xlu0 %968
        %v971 = vadd.f32 %v962, %v969
        %v972 = vadd.f32 %v963, %v969
        %v973 = vadd.f32 %v964, %v969
        %v974 = vmax.f32 %v971, 0.0
        %v975 = vmax.f32 %v972, 0.0
        %v976 = vmax.f32 %v973, 0.0
        %v978 = vperm.slane %v383, 0
        %v979 = vperm.slane %v383, 1
        %v980 = vperm.slane %v383, 2
        %v984 = vmul.f32 %v974, %v978
        %v985 = vmul.f32 %v975, %v979
        %v986 = vmul.f32 %v976, %v980
        %v987 = vpack.c.bf16 %v985, %v984
        %v988 = vpack.c.bf16 %v986, %v986
        %v991 = vrot.slane %v987, 6
        %v992 = vrot.slane %v988, 6
        %993 = vrot.lane.b32.xlu0 %v991, 19
        %v994 = vpop.permute.xlu0 %993
        %995 = vrot.lane.b32.xlu0 %v992, 19
        %v996 = vpop.permute.xlu0 %995
        %v997 = vrot.slane %v994, 4
        %vm998 = vcmask 154624
        %v999 = vsel %vm998, %v997, %v994
        %v1000 = vsel %vm998, %v997, %v996
        %vm1003 = vcmask 1043610
        %vm1004 = vcmask 1047558
        %vm1005 = vmor %vm1004, %vm1003
        %1006 = vst.msk [vmem:[#allocation2] sm:$0xcc] %vm1005, %v999
        %vm1007 = vcmask 396290
        %1008 = vst.msk [vmem:[#allocation2 + $0x8] sm:$0xc] %vm1007, %v1000
        %v1009 = vld [vmem:[#allocation2] sm:$0xff]
        %v1010 = vld [vmem:[#allocation2 + $0x8] sm:$0xf]
        %v1011 = vld [vmem:[%s3] sm:$0x3]
        %s1012 = scalar_lea.vmem %s3, 2
        %v1013 = vld [vmem:[%s1012] sm:$0x3]
        %v1016 = vunpack.c.l.b16 %v1009
        %v1017 = vunpack.c.h.b16 %v1009
        %v1018 = vunpack.c.l.b16 %v1010
        %v1019 = vpack.c.b16 %v1016, %v1016
        %v1020 = vpack.c.b16 %v1017, %v1017
        %v1021 = vpack.c.b16 %v1018, %v1018
        %1022 = vrot.lane.b32.xlu0 %v1019, 127
        %v1023 = vpop.permute.xlu0 %1022
        %1024 = vrot.lane.b32.xlu0 %v1020, 127
        %v1025 = vpop.permute.xlu0 %1024
        %1026 = vrot.lane.b32.xlu0 %v1021, 127
        %v1027 = vpop.permute.xlu0 %1026
        %v1028 = vsel %vm403, %v1023, %v1025
        %v1029 = vsel %vm403, %v1025, %v1027
        %vm1030 = vcmask 64512
        %v1032 = vsel %vm1030, %v1013, 0
        %vm1034 = vcmask 1043456
        %v1036 = vsel %vm1034, %v1028, 0
        %v1039 = vsel %vm1034, %v1029, 0
        %v1042 = vsel %vm1034, %v1027, 0
        %1044 = vmatpush.bf16.msra.mxu0 0
        %1045 = vmatpush.bf16.msra.mxu0 0
        %1046 = vmatpush.bf16.msra.mxu0 0
        %1047 = vmatpush.bf16.msra.mxu0 0
        %1048 = vmatpush.bf16.msra.mxu0 0
        %1049 = vmatpush.bf16.msra.mxu0 0
        %1050 = vmatpush.bf16.msra.mxu0 0
        %1051 = vmatpush.bf16.msra.mxu0 %v1036
        %1052 = vmatmul.bf16.gmra.mxu0 %v1032
        %v1053 = vpop.f32.mrf.mxu0
        %v1054 = vadd.f32 0.0, %v1053
        %v1055 = vpop.f32.mrf.mxu0
        %1056 = vdwg.mxu0
        %1057 = vmatpush.bf16.msra.mxu0 0
        %1058 = vmatpush.bf16.msra.mxu0 0
        %1059 = vmatpush.bf16.msra.mxu0 0
        %1060 = vmatpush.bf16.msra.mxu0 0
        %1061 = vmatpush.bf16.msra.mxu0 0
        %1062 = vmatpush.bf16.msra.mxu0 0
        %1063 = vmatpush.bf16.msra.mxu0 0
        %1064 = vmatpush.bf16.msra.mxu0 %v1039
        %1065 = vmatmul.bf16.gmra.mxu0 %v1032
        %v1066 = vpop.f32.mrf.mxu0
        %v1067 = vadd.f32 0.0, %v1066
        %v1068 = vpop.f32.mrf.mxu0
        %1069 = vdwg.mxu0
        %1070 = vmatpush.bf16.msra.mxu0 0
        %1071 = vmatpush.bf16.msra.mxu0 0
        %1072 = vmatpush.bf16.msra.mxu0 0
        %1073 = vmatpush.bf16.msra.mxu0 0
        %1074 = vmatpush.bf16.msra.mxu0 0
        %1075 = vmatpush.bf16.msra.mxu0 0
        %1076 = vmatpush.bf16.msra.mxu0 0
        %1077 = vmatpush.bf16.msra.mxu0 %v1042
        %1078 = vmatmul.bf16.gmra.mxu0 %v1032
        %v1079 = vpop.f32.mrf.mxu0
        %v1080 = vadd.f32 0.0, %v1079
        %v1081 = vpop.f32.mrf.mxu0
        %1082 = vdwg.mxu0
        %v1084 = vsel %vm1030, %v1011, 0
        %v1087 = vsel %vm1034, %v1019, 0
        %v1090 = vsel %vm1034, %v1020, 0
        %v1093 = vsel %vm1034, %v1021, 0
        %1095 = vmatpush.bf16.msra.mxu0 0
        %1096 = vmatpush.bf16.msra.mxu0 0
        %1097 = vmatpush.bf16.msra.mxu0 0
        %1098 = vmatpush.bf16.msra.mxu0 0
        %1099 = vmatpush.bf16.msra.mxu0 0
        %1100 = vmatpush.bf16.msra.mxu0 0
        %1101 = vmatpush.bf16.msra.mxu0 0
        %1102 = vmatpush.bf16.msra.mxu0 %v1087
        %1103 = vmatmul.bf16.gmra.mxu0 %v1084
        %v1104 = vpop.f32.mrf.mxu0
        %v1105 = vadd.f32 %v1054, %v1104
        %v1106 = vpop.f32.mrf.mxu0
        %1107 = vdwg.mxu0
        %1108 = vmatpush.bf16.msra.mxu0 0
        %1109 = vmatpush.bf16.msra.mxu0 0
        %1110 = vmatpush.bf16.msra.mxu0 0
        %1111 = vmatpush.bf16.msra.mxu0 0
        %1112 = vmatpush.bf16.msra.mxu0 0
        %1113 = vmatpush.bf16.msra.mxu0 0
        %1114 = vmatpush.bf16.msra.mxu0 0
        %1115 = vmatpush.bf16.msra.mxu0 %v1090
        %1116 = vmatmul.bf16.gmra.mxu0 %v1084
        %v1117 = vpop.f32.mrf.mxu0
        %v1118 = vadd.f32 %v1067, %v1117
        %v1119 = vpop.f32.mrf.mxu0
        %1120 = vdwg.mxu0
        %1121 = vmatpush.bf16.msra.mxu0 0
        %1122 = vmatpush.bf16.msra.mxu0 0
        %1123 = vmatpush.bf16.msra.mxu0 0
        %1124 = vmatpush.bf16.msra.mxu0 0
        %1125 = vmatpush.bf16.msra.mxu0 0
        %1126 = vmatpush.bf16.msra.mxu0 0
        %1127 = vmatpush.bf16.msra.mxu0 0
        %1128 = vmatpush.bf16.msra.mxu0 %v1093
        %1129 = vmatmul.bf16.gmra.mxu0 %v1084
        %v1130 = vpop.f32.mrf.mxu0
        %v1131 = vadd.f32 %v1080, %v1130
        %v1132 = vpop.f32.mrf.mxu0
        %1133 = vdwg.mxu0
        %s1134 = scalar_lea.vmem %s3, 4
        %v1135 = vld [vmem:[%s1134] sm:$0x3]
        %1136 = vrot.lane.b32.xlu0 %v1019, 126
        %v1137 = vpop.permute.xlu0 %1136
        %1138 = vrot.lane.b32.xlu0 %v1020, 126
        %v1139 = vpop.permute.xlu0 %1138
        %1140 = vrot.lane.b32.xlu0 %v1021, 126
        %v1141 = vpop.permute.xlu0 %1140
        %v1142 = vsel %vm518, %v1137, %v1139
        %v1143 = vsel %vm518, %v1139, %v1141
        %v1145 = vsel %vm1030, %v1135, 0
        %v1148 = vsel %vm1034, %v1142, 0
        %v1151 = vsel %vm1034, %v1143, 0
        %v1154 = vsel %vm1034, %v1141, 0
        %1156 = vmatpush.bf16.msra.mxu0 0
        %1157 = vmatpush.bf16.msra.mxu0 0
        %1158 = vmatpush.bf16.msra.mxu0 0
        %1159 = vmatpush.bf16.msra.mxu0 0
        %1160 = vmatpush.bf16.msra.mxu0 0
        %1161 = vmatpush.bf16.msra.mxu0 0
        %1162 = vmatpush.bf16.msra.mxu0 0
        %1163 = vmatpush.bf16.msra.mxu0 %v1148
        %1164 = vmatmul.bf16.gmra.mxu0 %v1145
        %v1165 = vpop.f32.mrf.mxu0
        %v1166 = vadd.f32 0.0, %v1165
        %v1167 = vpop.f32.mrf.mxu0
        %1168 = vdwg.mxu0
        %1169 = vmatpush.bf16.msra.mxu0 0
        %1170 = vmatpush.bf16.msra.mxu0 0
        %1171 = vmatpush.bf16.msra.mxu0 0
        %1172 = vmatpush.bf16.msra.mxu0 0
        %1173 = vmatpush.bf16.msra.mxu0 0
        %1174 = vmatpush.bf16.msra.mxu0 0
        %1175 = vmatpush.bf16.msra.mxu0 0
        %1176 = vmatpush.bf16.msra.mxu0 %v1151
        %1177 = vmatmul.bf16.gmra.mxu0 %v1145
        %v1178 = vpop.f32.mrf.mxu0
        %v1179 = vadd.f32 0.0, %v1178
        %v1180 = vpop.f32.mrf.mxu0
        %1181 = vdwg.mxu0
        %1182 = vmatpush.bf16.msra.mxu0 0
        %1183 = vmatpush.bf16.msra.mxu0 0
        %1184 = vmatpush.bf16.msra.mxu0 0
        %1185 = vmatpush.bf16.msra.mxu0 0
        %1186 = vmatpush.bf16.msra.mxu0 0
        %1187 = vmatpush.bf16.msra.mxu0 0
        %1188 = vmatpush.bf16.msra.mxu0 0
        %1189 = vmatpush.bf16.msra.mxu0 %v1154
        %1190 = vmatmul.bf16.gmra.mxu0 %v1145
        %v1191 = vpop.f32.mrf.mxu0
        %v1192 = vadd.f32 0.0, %v1191
        %v1193 = vpop.f32.mrf.mxu0
        %1194 = vdwg.mxu0
        %v1195 = vadd.f32 %v1105, %v1166
        %v1196 = vadd.f32 %v1118, %v1179
        %v1197 = vadd.f32 %v1131, %v1192
        %s1198 = scalar_lea.vmem %s3, 6
        %v1199 = vld [vmem:[%s1198] sm:$0x3]
        %1200 = vrot.lane.b32.xlu0 %v1019, 110
        %v1201 = vpop.permute.xlu0 %1200
        %1202 = vrot.lane.b32.xlu0 %v1020, 110
        %v1203 = vpop.permute.xlu0 %1202
        %1204 = vrot.lane.b32.xlu0 %v1021, 110
        %v1205 = vpop.permute.xlu0 %1204
        %v1206 = vsel %vm583, %v1201, %v1203
        %v1207 = vsel %vm583, %v1203, %v1205
        %v1209 = vsel %vm1030, %v1199, 0
        %v1212 = vsel %vm1034, %v1206, 0
        %v1215 = vsel %vm1034, %v1207, 0
        %v1218 = vsel %vm1034, %v1205, 0
        %1220 = vmatpush.bf16.msra.mxu0 0
        %1221 = vmatpush.bf16.msra.mxu0 0
        %1222 = vmatpush.bf16.msra.mxu0 0
        %1223 = vmatpush.bf16.msra.mxu0 0
        %1224 = vmatpush.bf16.msra.mxu0 0
        %1225 = vmatpush.bf16.msra.mxu0 0
        %1226 = vmatpush.bf16.msra.mxu0 0
        %1227 = vmatpush.bf16.msra.mxu0 %v1212
        %1228 = vmatmul.bf16.gmra.mxu0 %v1209
        %v1229 = vpop.f32.mrf.mxu0
        %v1230 = vadd.f32 0.0, %v1229
        %v1231 = vpop.f32.mrf.mxu0
        %1232 = vdwg.mxu0
        %1233 = vmatpush.bf16.msra.mxu0 0
        %1234 = vmatpush.bf16.msra.mxu0 0
        %1235 = vmatpush.bf16.msra.mxu0 0
        %1236 = vmatpush.bf16.msra.mxu0 0
        %1237 = vmatpush.bf16.msra.mxu0 0
        %1238 = vmatpush.bf16.msra.mxu0 0
        %1239 = vmatpush.bf16.msra.mxu0 0
        %1240 = vmatpush.bf16.msra.mxu0 %v1215
        %1241 = vmatmul.bf16.gmra.mxu0 %v1209
        %v1242 = vpop.f32.mrf.mxu0
        %v1243 = vadd.f32 0.0, %v1242
        %v1244 = vpop.f32.mrf.mxu0
        %1245 = vdwg.mxu0
        %1246 = vmatpush.bf16.msra.mxu0 0
        %1247 = vmatpush.bf16.msra.mxu0 0
        %1248 = vmatpush.bf16.msra.mxu0 0
        %1249 = vmatpush.bf16.msra.mxu0 0
        %1250 = vmatpush.bf16.msra.mxu0 0
        %1251 = vmatpush.bf16.msra.mxu0 0
        %1252 = vmatpush.bf16.msra.mxu0 0
        %1253 = vmatpush.bf16.msra.mxu0 %v1218
        %1254 = vmatmul.bf16.gmra.mxu0 %v1209
        %v1255 = vpop.f32.mrf.mxu0
        %v1256 = vadd.f32 0.0, %v1255
        %v1257 = vpop.f32.mrf.mxu0
        %1258 = vdwg.mxu0
        %v1259 = vadd.f32 %v1195, %v1230
        %v1260 = vadd.f32 %v1196, %v1243
        %v1261 = vadd.f32 %v1197, %v1256
        %s1262 = scalar_lea.vmem %s3, 8
        %v1263 = vld [vmem:[%s1262] sm:$0x3]
        %1264 = vrot.lane.b32.xlu0 %v1019, 109
        %v1265 = vpop.permute.xlu0 %1264
        %1266 = vrot.lane.b32.xlu0 %v1020, 109
        %v1267 = vpop.permute.xlu0 %1266
        %1268 = vrot.lane.b32.xlu0 %v1021, 109
        %v1269 = vpop.permute.xlu0 %1268
        %v1270 = vsel %vm648, %v1265, %v1267
        %v1271 = vsel %vm648, %v1267, %v1269
        %v1273 = vsel %vm1030, %v1263, 0
        %v1276 = vsel %vm1034, %v1270, 0
        %v1279 = vsel %vm1034, %v1271, 0
        %v1282 = vsel %vm1034, %v1269, 0
        %1284 = vmatpush.bf16.msra.mxu0 0
        %1285 = vmatpush.bf16.msra.mxu0 0
        %1286 = vmatpush.bf16.msra.mxu0 0
        %1287 = vmatpush.bf16.msra.mxu0 0
        %1288 = vmatpush.bf16.msra.mxu0 0
        %1289 = vmatpush.bf16.msra.mxu0 0
        %1290 = vmatpush.bf16.msra.mxu0 0
        %1291 = vmatpush.bf16.msra.mxu0 %v1276
        %1292 = vmatmul.bf16.gmra.mxu0 %v1273
        %v1293 = vpop.f32.mrf.mxu0
        %v1294 = vadd.f32 0.0, %v1293
        %v1295 = vpop.f32.mrf.mxu0
        %1296 = vdwg.mxu0
        %1297 = vmatpush.bf16.msra.mxu0 0
        %1298 = vmatpush.bf16.msra.mxu0 0
        %1299 = vmatpush.bf16.msra.mxu0 0
        %1300 = vmatpush.bf16.msra.mxu0 0
        %1301 = vmatpush.bf16.msra.mxu0 0
        %1302 = vmatpush.bf16.msra.mxu0 0
        %1303 = vmatpush.bf16.msra.mxu0 0
        %1304 = vmatpush.bf16.msra.mxu0 %v1279
        %1305 = vmatmul.bf16.gmra.mxu0 %v1273
        %v1306 = vpop.f32.mrf.mxu0
        %v1307 = vadd.f32 0.0, %v1306
        %v1308 = vpop.f32.mrf.mxu0
        %1309 = vdwg.mxu0
        %1310 = vmatpush.bf16.msra.mxu0 0
        %1311 = vmatpush.bf16.msra.mxu0 0
        %1312 = vmatpush.bf16.msra.mxu0 0
        %1313 = vmatpush.bf16.msra.mxu0 0
        %1314 = vmatpush.bf16.msra.mxu0 0
        %1315 = vmatpush.bf16.msra.mxu0 0
        %1316 = vmatpush.bf16.msra.mxu0 0
        %1317 = vmatpush.bf16.msra.mxu0 %v1282
        %1318 = vmatmul.bf16.gmra.mxu0 %v1273
        %v1319 = vpop.f32.mrf.mxu0
        %v1320 = vadd.f32 0.0, %v1319
        %v1321 = vpop.f32.mrf.mxu0
        %1322 = vdwg.mxu0
        %v1323 = vadd.f32 %v1259, %v1294
        %v1324 = vadd.f32 %v1260, %v1307
        %v1325 = vadd.f32 %v1261, %v1320
        %s1326 = scalar_lea.vmem %s3, 10
        %v1327 = vld [vmem:[%s1326] sm:$0x3]
        %1328 = vrot.lane.b32.xlu0 %v1019, 108
        %v1329 = vpop.permute.xlu0 %1328
        %1330 = vrot.lane.b32.xlu0 %v1020, 108
        %v1331 = vpop.permute.xlu0 %1330
        %1332 = vrot.lane.b32.xlu0 %v1021, 108
        %v1333 = vpop.permute.xlu0 %1332
        %v1334 = vsel %vm713, %v1329, %v1331
        %v1335 = vsel %vm713, %v1331, %v1333
        %v1337 = vsel %vm1030, %v1327, 0
        %v1340 = vsel %vm1034, %v1334, 0
        %v1343 = vsel %vm1034, %v1335, 0
        %v1346 = vsel %vm1034, %v1333, 0
        %1348 = vmatpush.bf16.msra.mxu0 0
        %1349 = vmatpush.bf16.msra.mxu0 0
        %1350 = vmatpush.bf16.msra.mxu0 0
        %1351 = vmatpush.bf16.msra.mxu0 0
        %1352 = vmatpush.bf16.msra.mxu0 0
        %1353 = vmatpush.bf16.msra.mxu0 0
        %1354 = vmatpush.bf16.msra.mxu0 0
        %1355 = vmatpush.bf16.msra.mxu0 %v1340
        %1356 = vmatmul.bf16.gmra.mxu0 %v1337
        %v1357 = vpop.f32.mrf.mxu0
        %v1358 = vadd.f32 0.0, %v1357
        %v1359 = vpop.f32.mrf.mxu0
        %1360 = vdwg.mxu0
        %1361 = vmatpush.bf16.msra.mxu0 0
        %1362 = vmatpush.bf16.msra.mxu0 0
        %1363 = vmatpush.bf16.msra.mxu0 0
        %1364 = vmatpush.bf16.msra.mxu0 0
        %1365 = vmatpush.bf16.msra.mxu0 0
        %1366 = vmatpush.bf16.msra.mxu0 0
        %1367 = vmatpush.bf16.msra.mxu0 0
        %1368 = vmatpush.bf16.msra.mxu0 %v1343
        %1369 = vmatmul.bf16.gmra.mxu0 %v1337
        %v1370 = vpop.f32.mrf.mxu0
        %v1371 = vadd.f32 0.0, %v1370
        %v1372 = vpop.f32.mrf.mxu0
        %1373 = vdwg.mxu0
        %1374 = vmatpush.bf16.msra.mxu0 0
        %1375 = vmatpush.bf16.msra.mxu0 0
        %1376 = vmatpush.bf16.msra.mxu0 0
        %1377 = vmatpush.bf16.msra.mxu0 0
        %1378 = vmatpush.bf16.msra.mxu0 0
        %1379 = vmatpush.bf16.msra.mxu0 0
        %1380 = vmatpush.bf16.msra.mxu0 0
        %1381 = vmatpush.bf16.msra.mxu0 %v1346
        %1382 = vmatmul.bf16.gmra.mxu0 %v1337
        %v1383 = vpop.f32.mrf.mxu0
        %v1384 = vadd.f32 0.0, %v1383
        %v1385 = vpop.f32.mrf.mxu0
        %1386 = vdwg.mxu0
        %v1387 = vadd.f32 %v1323, %v1358
        %v1388 = vadd.f32 %v1324, %v1371
        %v1389 = vadd.f32 %v1325, %v1384
        %s1390 = scalar_lea.vmem %s3, 12
        %v1391 = vld [vmem:[%s1390] sm:$0x3]
        %1392 = vrot.lane.b32.xlu0 %v1019, 92
        %v1393 = vpop.permute.xlu0 %1392
        %1394 = vrot.lane.b32.xlu0 %v1020, 92
        %v1395 = vpop.permute.xlu0 %1394
        %1396 = vrot.lane.b32.xlu0 %v1021, 92
        %v1397 = vpop.permute.xlu0 %1396
        %v1398 = vsel %vm778, %v1393, %v1395
        %v1399 = vsel %vm778, %v1395, %v1397
        %v1401 = vsel %vm1030, %v1391, 0
        %v1404 = vsel %vm1034, %v1398, 0
        %v1407 = vsel %vm1034, %v1399, 0
        %v1410 = vsel %vm1034, %v1397, 0
        %1412 = vmatpush.bf16.msra.mxu0 0
        %1413 = vmatpush.bf16.msra.mxu0 0
        %1414 = vmatpush.bf16.msra.mxu0 0
        %1415 = vmatpush.bf16.msra.mxu0 0
        %1416 = vmatpush.bf16.msra.mxu0 0
        %1417 = vmatpush.bf16.msra.mxu0 0
        %1418 = vmatpush.bf16.msra.mxu0 0
        %1419 = vmatpush.bf16.msra.mxu0 %v1404
        %1420 = vmatmul.bf16.gmra.mxu0 %v1401
        %v1421 = vpop.f32.mrf.mxu0
        %v1422 = vadd.f32 0.0, %v1421
        %v1423 = vpop.f32.mrf.mxu0
        %1424 = vdwg.mxu0
        %1425 = vmatpush.bf16.msra.mxu0 0
        %1426 = vmatpush.bf16.msra.mxu0 0
        %1427 = vmatpush.bf16.msra.mxu0 0
        %1428 = vmatpush.bf16.msra.mxu0 0
        %1429 = vmatpush.bf16.msra.mxu0 0
        %1430 = vmatpush.bf16.msra.mxu0 0
        %1431 = vmatpush.bf16.msra.mxu0 0
        %1432 = vmatpush.bf16.msra.mxu0 %v1407
        %1433 = vmatmul.bf16.gmra.mxu0 %v1401
        %v1434 = vpop.f32.mrf.mxu0
        %v1435 = vadd.f32 0.0, %v1434
        %v1436 = vpop.f32.mrf.mxu0
        %1437 = vdwg.mxu0
        %1438 = vmatpush.bf16.msra.mxu0 0
        %1439 = vmatpush.bf16.msra.mxu0 0
        %1440 = vmatpush.bf16.msra.mxu0 0
        %1441 = vmatpush.bf16.msra.mxu0 0
        %1442 = vmatpush.bf16.msra.mxu0 0
        %1443 = vmatpush.bf16.msra.mxu0 0
        %1444 = vmatpush.bf16.msra.mxu0 0
        %1445 = vmatpush.bf16.msra.mxu0 %v1410
        %1446 = vmatmul.bf16.gmra.mxu0 %v1401
        %v1447 = vpop.f32.mrf.mxu0
        %v1448 = vadd.f32 0.0, %v1447
        %v1449 = vpop.f32.mrf.mxu0
        %1450 = vdwg.mxu0
        %v1451 = vadd.f32 %v1387, %v1422
        %v1452 = vadd.f32 %v1388, %v1435
        %v1453 = vadd.f32 %v1389, %v1448
        %s1454 = scalar_lea.vmem %s3, 14
        %v1455 = vld [vmem:[%s1454] sm:$0x3]
        %1456 = vrot.lane.b32.xlu0 %v1019, 91
        %v1457 = vpop.permute.xlu0 %1456
        %1458 = vrot.lane.b32.xlu0 %v1020, 91
        %v1459 = vpop.permute.xlu0 %1458
        %1460 = vrot.lane.b32.xlu0 %v1021, 91
        %v1461 = vpop.permute.xlu0 %1460
        %v1462 = vsel %vm843, %v1457, %v1459
        %v1463 = vsel %vm843, %v1459, %v1461
        %v1465 = vsel %vm1030, %v1455, 0
        %v1468 = vsel %vm1034, %v1462, 0
        %v1471 = vsel %vm1034, %v1463, 0
        %v1474 = vsel %vm1034, %v1461, 0
        %1476 = vmatpush.bf16.msra.mxu0 0
        %1477 = vmatpush.bf16.msra.mxu0 0
        %1478 = vmatpush.bf16.msra.mxu0 0
        %1479 = vmatpush.bf16.msra.mxu0 0
        %1480 = vmatpush.bf16.msra.mxu0 0
        %1481 = vmatpush.bf16.msra.mxu0 0
        %1482 = vmatpush.bf16.msra.mxu0 0
        %1483 = vmatpush.bf16.msra.mxu0 %v1468
        %1484 = vmatmul.bf16.gmra.mxu0 %v1465
        %v1485 = vpop.f32.mrf.mxu0
        %v1486 = vadd.f32 0.0, %v1485
        %v1487 = vpop.f32.mrf.mxu0
        %1488 = vdwg.mxu0
        %1489 = vmatpush.bf16.msra.mxu0 0
        %1490 = vmatpush.bf16.msra.mxu0 0
        %1491 = vmatpush.bf16.msra.mxu0 0
        %1492 = vmatpush.bf16.msra.mxu0 0
        %1493 = vmatpush.bf16.msra.mxu0 0
        %1494 = vmatpush.bf16.msra.mxu0 0
        %1495 = vmatpush.bf16.msra.mxu0 0
        %1496 = vmatpush.bf16.msra.mxu0 %v1471
        %1497 = vmatmul.bf16.gmra.mxu0 %v1465
        %v1498 = vpop.f32.mrf.mxu0
        %v1499 = vadd.f32 0.0, %v1498
        %v1500 = vpop.f32.mrf.mxu0
        %1501 = vdwg.mxu0
        %1502 = vmatpush.bf16.msra.mxu0 0
        %1503 = vmatpush.bf16.msra.mxu0 0
        %1504 = vmatpush.bf16.msra.mxu0 0
        %1505 = vmatpush.bf16.msra.mxu0 0
        %1506 = vmatpush.bf16.msra.mxu0 0
        %1507 = vmatpush.bf16.msra.mxu0 0
        %1508 = vmatpush.bf16.msra.mxu0 0
        %1509 = vmatpush.bf16.msra.mxu0 %v1474
        %1510 = vmatmul.bf16.gmra.mxu0 %v1465
        %v1511 = vpop.f32.mrf.mxu0
        %v1512 = vadd.f32 0.0, %v1511
        %v1513 = vpop.f32.mrf.mxu0
        %1514 = vdwg.mxu0
        %v1515 = vadd.f32 %v1451, %v1486
        %v1516 = vadd.f32 %v1452, %v1499
        %v1517 = vadd.f32 %v1453, %v1512
        %s1518 = scalar_lea.vmem %s3, 16
        %v1519 = vld [vmem:[%s1518] sm:$0x3]
        %1520 = vrot.lane.b32.xlu0 %v1019, 90
        %v1521 = vpop.permute.xlu0 %1520
        %1522 = vrot.lane.b32.xlu0 %v1020, 90
        %v1523 = vpop.permute.xlu0 %1522
        %1524 = vrot.lane.b32.xlu0 %v1021, 90
        %v1525 = vpop.permute.xlu0 %1524
        %v1526 = vsel %vm908, %v1521, %v1523
        %v1527 = vsel %vm908, %v1523, %v1525
        %v1529 = vsel %vm1030, %v1519, 0
        %v1532 = vsel %vm1034, %v1526, 0
        %v1535 = vsel %vm1034, %v1527, 0
        %v1538 = vsel %vm1034, %v1525, 0
        %1540 = vmatpush.bf16.msra.mxu0 0
        %1541 = vmatpush.bf16.msra.mxu0 0
        %1542 = vmatpush.bf16.msra.mxu0 0
        %1543 = vmatpush.bf16.msra.mxu0 0
        %1544 = vmatpush.bf16.msra.mxu0 0
        %1545 = vmatpush.bf16.msra.mxu0 0
        %1546 = vmatpush.bf16.msra.mxu0 0
        %1547 = vmatpush.bf16.msra.mxu0 %v1532
        %1548 = vmatmul.bf16.gmra.mxu0 %v1529
        %v1549 = vpop.f32.mrf.mxu0
        %v1550 = vadd.f32 0.0, %v1549
        %v1551 = vpop.f32.mrf.mxu0
        %1552 = vdwg.mxu0
        %1553 = vmatpush.bf16.msra.mxu0 0
        %1554 = vmatpush.bf16.msra.mxu0 0
        %1555 = vmatpush.bf16.msra.mxu0 0
        %1556 = vmatpush.bf16.msra.mxu0 0
        %1557 = vmatpush.bf16.msra.mxu0 0
        %1558 = vmatpush.bf16.msra.mxu0 0
        %1559 = vmatpush.bf16.msra.mxu0 0
        %1560 = vmatpush.bf16.msra.mxu0 %v1535
        %1561 = vmatmul.bf16.gmra.mxu0 %v1529
        %v1562 = vpop.f32.mrf.mxu0
        %v1563 = vadd.f32 0.0, %v1562
        %v1564 = vpop.f32.mrf.mxu0
        %1565 = vdwg.mxu0
        %1566 = vmatpush.bf16.msra.mxu0 0
        %1567 = vmatpush.bf16.msra.mxu0 0
        %1568 = vmatpush.bf16.msra.mxu0 0
        %1569 = vmatpush.bf16.msra.mxu0 0
        %1570 = vmatpush.bf16.msra.mxu0 0
        %1571 = vmatpush.bf16.msra.mxu0 0
        %1572 = vmatpush.bf16.msra.mxu0 0
        %1573 = vmatpush.bf16.msra.mxu0 %v1538
        %1574 = vmatmul.bf16.gmra.mxu0 %v1529
        %v1575 = vpop.f32.mrf.mxu0
        %v1576 = vadd.f32 0.0, %v1575
        %v1577 = vpop.f32.mrf.mxu0
        %1578 = vdwg.mxu0
        %v1579 = vadd.f32 %v1515, %v1550
        %v1580 = vadd.f32 %v1516, %v1563
        %v1581 = vadd.f32 %v1517, %v1576
        %v1582 = vld [vmem:[%s6] sm:$0xf]
        %1584 = vset.pattern.permute.xlu0 0
        %1585 = vperm.xlu0 %1584, %v1582
        %v1586 = vpop.permute.xlu0 %1585
        %v1588 = vadd.f32 %v1579, %v1586
        %v1589 = vadd.f32 %v1580, %v1586
        %v1590 = vadd.f32 %v1581, %v1586
        %v1591 = vmax.f32 %v1588, 0.0
        %v1592 = vmax.f32 %v1589, 0.0
        %v1593 = vmax.f32 %v1590, 0.0
        %v1594 = vmul.f32 %v1591, %v978
        %v1595 = vmul.f32 %v1592, %v979
        %v1596 = vmul.f32 %v1593, %v980
        %v1597 = vpack.c.bf16 %v1595, %v1594
        %v1598 = vpack.c.bf16 %v1596, %v1596
        %1601 = vrot.lane.b32.xlu0 %v1597, 19
        %v1602 = vpop.permute.xlu0 %1601
        %1603 = vrot.lane.b32.xlu0 %v1598, 19
        %v1604 = vpop.permute.xlu0 %1603
        %v1605 = vrot.slane %v1602, 4
        %v1606 = vsel %vm998, %v1605, %v1602
        %v1607 = vsel %vm998, %v1605, %v1604
        %vm1610 = vcmask 1041560
        %vm1611 = vcmask 1045508
        %vm1612 = vmor %vm1611, %vm1610
        %1613 = vst.msk [vmem:[#allocation2 + $0xc] sm:$0x33] %vm1612, %v1606
        %vm1614 = vcmask 394240
        %1615 = vst.msk [vmem:[#allocation2 + $0x14] sm:$0x3] %vm1614, %v1607
        %v1616 = vld [vmem:[#allocation2] sm:$0xff]
        %v1617 = vld [vmem:[#allocation2 + $0x8] sm:$0xf]
        %v1618 = vld [vmem:[#allocation2 + $0xc] sm:$0x33]
        %v1619 = vld [vmem:[#allocation2 + $0x14] sm:$0x3]
        %v1620 = vld [vmem:[%s4] sm:$0x3]
        %s1621 = scalar_lea.vmem %s4, 2
        %v1622 = vld [vmem:[%s1621] sm:$0x3]
        %v1627 = vunpack.c.l.b16 %v1616
        %v1628 = vunpack.c.h.b16 %v1616
        %v1629 = vunpack.c.l.b16 %v1617
        %v1630 = vunpack.c.l.b16 %v1618
        %v1631 = vunpack.c.h.b16 %v1618
        %v1632 = vunpack.c.l.b16 %v1619
        %v1633 = vpack.c.b16 %v1630, %v1627
        %v1634 = vpack.c.b16 %v1631, %v1628
        %v1635 = vpack.c.b16 %v1632, %v1629
        %1636 = vrot.lane.b32.xlu0 %v1633, 127
        %v1637 = vpop.permute.xlu0 %1636
        %1638 = vrot.lane.b32.xlu0 %v1634, 127
        %v1639 = vpop.permute.xlu0 %1638
        %1640 = vrot.lane.b32.xlu0 %v1635, 127
        %v1641 = vpop.permute.xlu0 %1640
        %v1642 = vsel %vm403, %v1637, %v1639
        %v1643 = vsel %vm403, %v1639, %v1641
        %vm1644 = vcmask 97280
        %v1646 = vsel %vm1644, %v1622, 0
        %vm1648 = vcmask 1045504
        %v1650 = vsel %vm1648, %v1642, 0
        %v1653 = vsel %vm1648, %v1643, 0
        %v1656 = vsel %vm1648, %v1641, 0
        %1658 = vmatpush.bf16.msra.mxu0 0
        %1659 = vmatpush.bf16.msra.mxu0 0
        %1660 = vmatpush.bf16.msra.mxu0 0
        %1661 = vmatpush.bf16.msra.mxu0 0
        %1662 = vmatpush.bf16.msra.mxu0 0
        %1663 = vmatpush.bf16.msra.mxu0 0
        %1664 = vmatpush.bf16.msra.mxu0 0
        %1665 = vmatpush.bf16.msra.mxu0 %v1650
        %1666 = vmatmul.bf16.gmra.mxu0 %v1646
        %v1667 = vpop.f32.mrf.mxu0
        %v1668 = vadd.f32 0.0, %v1667
        %v1669 = vpop.f32.mrf.mxu0
        %1670 = vdwg.mxu0
        %1671 = vmatpush.bf16.msra.mxu0 0
        %1672 = vmatpush.bf16.msra.mxu0 0
        %1673 = vmatpush.bf16.msra.mxu0 0
        %1674 = vmatpush.bf16.msra.mxu0 0
        %1675 = vmatpush.bf16.msra.mxu0 0
        %1676 = vmatpush.bf16.msra.mxu0 0
        %1677 = vmatpush.bf16.msra.mxu0 0
        %1678 = vmatpush.bf16.msra.mxu0 %v1653
        %1679 = vmatmul.bf16.gmra.mxu0 %v1646
        %v1680 = vpop.f32.mrf.mxu0
        %v1681 = vadd.f32 0.0, %v1680
        %v1682 = vpop.f32.mrf.mxu0
        %1683 = vdwg.mxu0
        %1684 = vmatpush.bf16.msra.mxu0 0
        %1685 = vmatpush.bf16.msra.mxu0 0
        %1686 = vmatpush.bf16.msra.mxu0 0
        %1687 = vmatpush.bf16.msra.mxu0 0
        %1688 = vmatpush.bf16.msra.mxu0 0
        %1689 = vmatpush.bf16.msra.mxu0 0
        %1690 = vmatpush.bf16.msra.mxu0 0
        %1691 = vmatpush.bf16.msra.mxu0 %v1656
        %1692 = vmatmul.bf16.gmra.mxu0 %v1646
        %v1693 = vpop.f32.mrf.mxu0
        %v1694 = vadd.f32 0.0, %v1693
        %v1695 = vpop.f32.mrf.mxu0
        %1696 = vdwg.mxu0
        %v1698 = vsel %vm1644, %v1620, 0
        %v1701 = vsel %vm1648, %v1633, 0
        %v1704 = vsel %vm1648, %v1634, 0
        %v1707 = vsel %vm1648, %v1635, 0
        %1709 = vmatpush.bf16.msra.mxu0 0
        %1710 = vmatpush.bf16.msra.mxu0 0
        %1711 = vmatpush.bf16.msra.mxu0 0
        %1712 = vmatpush.bf16.msra.mxu0 0
        %1713 = vmatpush.bf16.msra.mxu0 0
        %1714 = vmatpush.bf16.msra.mxu0 0
        %1715 = vmatpush.bf16.msra.mxu0 0
        %1716 = vmatpush.bf16.msra.mxu0 %v1701
        %1717 = vmatmul.bf16.gmra.mxu0 %v1698
        %v1718 = vpop.f32.mrf.mxu0
        %v1719 = vadd.f32 %v1668, %v1718
        %v1720 = vpop.f32.mrf.mxu0
        %1721 = vdwg.mxu0
        %1722 = vmatpush.bf16.msra.mxu0 0
        %1723 = vmatpush.bf16.msra.mxu0 0
        %1724 = vmatpush.bf16.msra.mxu0 0
        %1725 = vmatpush.bf16.msra.mxu0 0
        %1726 = vmatpush.bf16.msra.mxu0 0
        %1727 = vmatpush.bf16.msra.mxu0 0
        %1728 = vmatpush.bf16.msra.mxu0 0
        %1729 = vmatpush.bf16.msra.mxu0 %v1704
        %1730 = vmatmul.bf16.gmra.mxu0 %v1698
        %v1731 = vpop.f32.mrf.mxu0
        %v1732 = vadd.f32 %v1681, %v1731
        %v1733 = vpop.f32.mrf.mxu0
        %1734 = vdwg.mxu0
        %1735 = vmatpush.bf16.msra.mxu0 0
        %1736 = vmatpush.bf16.msra.mxu0 0
        %1737 = vmatpush.bf16.msra.mxu0 0
        %1738 = vmatpush.bf16.msra.mxu0 0
        %1739 = vmatpush.bf16.msra.mxu0 0
        %1740 = vmatpush.bf16.msra.mxu0 0
        %1741 = vmatpush.bf16.msra.mxu0 0
        %1742 = vmatpush.bf16.msra.mxu0 %v1707
        %1743 = vmatmul.bf16.gmra.mxu0 %v1698
        %v1744 = vpop.f32.mrf.mxu0
        %v1745 = vadd.f32 %v1694, %v1744
        %v1746 = vpop.f32.mrf.mxu0
        %1747 = vdwg.mxu0
        %s1748 = scalar_lea.vmem %s4, 4
        %v1749 = vld [vmem:[%s1748] sm:$0x3]
        %1750 = vrot.lane.b32.xlu0 %v1633, 126
        %v1751 = vpop.permute.xlu0 %1750
        %1752 = vrot.lane.b32.xlu0 %v1634, 126
        %v1753 = vpop.permute.xlu0 %1752
        %1754 = vrot.lane.b32.xlu0 %v1635, 126
        %v1755 = vpop.permute.xlu0 %1754
        %v1756 = vsel %vm518, %v1751, %v1753
        %v1757 = vsel %vm518, %v1753, %v1755
        %v1759 = vsel %vm1644, %v1749, 0
        %v1762 = vsel %vm1648, %v1756, 0
        %v1765 = vsel %vm1648, %v1757, 0
        %v1768 = vsel %vm1648, %v1755, 0
        %1770 = vmatpush.bf16.msra.mxu0 0
        %1771 = vmatpush.bf16.msra.mxu0 0
        %1772 = vmatpush.bf16.msra.mxu0 0
        %1773 = vmatpush.bf16.msra.mxu0 0
        %1774 = vmatpush.bf16.msra.mxu0 0
        %1775 = vmatpush.bf16.msra.mxu0 0
        %1776 = vmatpush.bf16.msra.mxu0 0
        %1777 = vmatpush.bf16.msra.mxu0 %v1762
        %1778 = vmatmul.bf16.gmra.mxu0 %v1759
        %v1779 = vpop.f32.mrf.mxu0
        %v1780 = vadd.f32 0.0, %v1779
        %v1781 = vpop.f32.mrf.mxu0
        %1782 = vdwg.mxu0
        %1783 = vmatpush.bf16.msra.mxu0 0
        %1784 = vmatpush.bf16.msra.mxu0 0
        %1785 = vmatpush.bf16.msra.mxu0 0
        %1786 = vmatpush.bf16.msra.mxu0 0
        %1787 = vmatpush.bf16.msra.mxu0 0
        %1788 = vmatpush.bf16.msra.mxu0 0
        %1789 = vmatpush.bf16.msra.mxu0 0
        %1790 = vmatpush.bf16.msra.mxu0 %v1765
        %1791 = vmatmul.bf16.gmra.mxu0 %v1759
        %v1792 = vpop.f32.mrf.mxu0
        %v1793 = vadd.f32 0.0, %v1792
        %v1794 = vpop.f32.mrf.mxu0
        %1795 = vdwg.mxu0
        %1796 = vmatpush.bf16.msra.mxu0 0
        %1797 = vmatpush.bf16.msra.mxu0 0
        %1798 = vmatpush.bf16.msra.mxu0 0
        %1799 = vmatpush.bf16.msra.mxu0 0
        %1800 = vmatpush.bf16.msra.mxu0 0
        %1801 = vmatpush.bf16.msra.mxu0 0
        %1802 = vmatpush.bf16.msra.mxu0 0
        %1803 = vmatpush.bf16.msra.mxu0 %v1768
        %1804 = vmatmul.bf16.gmra.mxu0 %v1759
        %v1805 = vpop.f32.mrf.mxu0
        %v1806 = vadd.f32 0.0, %v1805
        %v1807 = vpop.f32.mrf.mxu0
        %1808 = vdwg.mxu0
        %v1809 = vadd.f32 %v1719, %v1780
        %v1810 = vadd.f32 %v1732, %v1793
        %v1811 = vadd.f32 %v1745, %v1806
        %s1812 = scalar_lea.vmem %s4, 6
        %v1813 = vld [vmem:[%s1812] sm:$0x3]
        %1814 = vrot.lane.b32.xlu0 %v1633, 110
        %v1815 = vpop.permute.xlu0 %1814
        %1816 = vrot.lane.b32.xlu0 %v1634, 110
        %v1817 = vpop.permute.xlu0 %1816
        %1818 = vrot.lane.b32.xlu0 %v1635, 110
        %v1819 = vpop.permute.xlu0 %1818
        %v1820 = vsel %vm583, %v1815, %v1817
        %v1821 = vsel %vm583, %v1817, %v1819
        %v1823 = vsel %vm1644, %v1813, 0
        %v1826 = vsel %vm1648, %v1820, 0
        %v1829 = vsel %vm1648, %v1821, 0
        %v1832 = vsel %vm1648, %v1819, 0
        %1834 = vmatpush.bf16.msra.mxu0 0
        %1835 = vmatpush.bf16.msra.mxu0 0
        %1836 = vmatpush.bf16.msra.mxu0 0
        %1837 = vmatpush.bf16.msra.mxu0 0
        %1838 = vmatpush.bf16.msra.mxu0 0
        %1839 = vmatpush.bf16.msra.mxu0 0
        %1840 = vmatpush.bf16.msra.mxu0 0
        %1841 = vmatpush.bf16.msra.mxu0 %v1826
        %1842 = vmatmul.bf16.gmra.mxu0 %v1823
        %v1843 = vpop.f32.mrf.mxu0
        %v1844 = vadd.f32 0.0, %v1843
        %v1845 = vpop.f32.mrf.mxu0
        %1846 = vdwg.mxu0
        %1847 = vmatpush.bf16.msra.mxu0 0
        %1848 = vmatpush.bf16.msra.mxu0 0
        %1849 = vmatpush.bf16.msra.mxu0 0
        %1850 = vmatpush.bf16.msra.mxu0 0
        %1851 = vmatpush.bf16.msra.mxu0 0
        %1852 = vmatpush.bf16.msra.mxu0 0
        %1853 = vmatpush.bf16.msra.mxu0 0
        %1854 = vmatpush.bf16.msra.mxu0 %v1829
        %1855 = vmatmul.bf16.gmra.mxu0 %v1823
        %v1856 = vpop.f32.mrf.mxu0
        %v1857 = vadd.f32 0.0, %v1856
        %v1858 = vpop.f32.mrf.mxu0
        %1859 = vdwg.mxu0
        %1860 = vmatpush.bf16.msra.mxu0 0
        %1861 = vmatpush.bf16.msra.mxu0 0
        %1862 = vmatpush.bf16.msra.mxu0 0
        %1863 = vmatpush.bf16.msra.mxu0 0
        %1864 = vmatpush.bf16.msra.mxu0 0
        %1865 = vmatpush.bf16.msra.mxu0 0
        %1866 = vmatpush.bf16.msra.mxu0 0
        %1867 = vmatpush.bf16.msra.mxu0 %v1832
        %1868 = vmatmul.bf16.gmra.mxu0 %v1823
        %v1869 = vpop.f32.mrf.mxu0
        %v1870 = vadd.f32 0.0, %v1869
        %v1871 = vpop.f32.mrf.mxu0
        %1872 = vdwg.mxu0
        %v1873 = vadd.f32 %v1809, %v1844
        %v1874 = vadd.f32 %v1810, %v1857
        %v1875 = vadd.f32 %v1811, %v1870
        %s1876 = scalar_lea.vmem %s4, 8
        %v1877 = vld [vmem:[%s1876] sm:$0x3]
        %1878 = vrot.lane.b32.xlu0 %v1633, 109
        %v1879 = vpop.permute.xlu0 %1878
        %1880 = vrot.lane.b32.xlu0 %v1634, 109
        %v1881 = vpop.permute.xlu0 %1880
        %1882 = vrot.lane.b32.xlu0 %v1635, 109
        %v1883 = vpop.permute.xlu0 %1882
        %v1884 = vsel %vm648, %v1879, %v1881
        %v1885 = vsel %vm648, %v1881, %v1883
        %v1887 = vsel %vm1644, %v1877, 0
        %v1890 = vsel %vm1648, %v1884, 0
        %v1893 = vsel %vm1648, %v1885, 0
        %v1896 = vsel %vm1648, %v1883, 0
        %1898 = vmatpush.bf16.msra.mxu0 0
        %1899 = vmatpush.bf16.msra.mxu0 0
        %1900 = vmatpush.bf16.msra.mxu0 0
        %1901 = vmatpush.bf16.msra.mxu0 0
        %1902 = vmatpush.bf16.msra.mxu0 0
        %1903 = vmatpush.bf16.msra.mxu0 0
        %1904 = vmatpush.bf16.msra.mxu0 0
        %1905 = vmatpush.bf16.msra.mxu0 %v1890
        %1906 = vmatmul.bf16.gmra.mxu0 %v1887
        %v1907 = vpop.f32.mrf.mxu0
        %v1908 = vadd.f32 0.0, %v1907
        %v1909 = vpop.f32.mrf.mxu0
        %1910 = vdwg.mxu0
        %1911 = vmatpush.bf16.msra.mxu0 0
        %1912 = vmatpush.bf16.msra.mxu0 0
        %1913 = vmatpush.bf16.msra.mxu0 0
        %1914 = vmatpush.bf16.msra.mxu0 0
        %1915 = vmatpush.bf16.msra.mxu0 0
        %1916 = vmatpush.bf16.msra.mxu0 0
        %1917 = vmatpush.bf16.msra.mxu0 0
        %1918 = vmatpush.bf16.msra.mxu0 %v1893
        %1919 = vmatmul.bf16.gmra.mxu0 %v1887
        %v1920 = vpop.f32.mrf.mxu0
        %v1921 = vadd.f32 0.0, %v1920
        %v1922 = vpop.f32.mrf.mxu0
        %1923 = vdwg.mxu0
        %1924 = vmatpush.bf16.msra.mxu0 0
        %1925 = vmatpush.bf16.msra.mxu0 0
        %1926 = vmatpush.bf16.msra.mxu0 0
        %1927 = vmatpush.bf16.msra.mxu0 0
        %1928 = vmatpush.bf16.msra.mxu0 0
        %1929 = vmatpush.bf16.msra.mxu0 0
        %1930 = vmatpush.bf16.msra.mxu0 0
        %1931 = vmatpush.bf16.msra.mxu0 %v1896
        %1932 = vmatmul.bf16.gmra.mxu0 %v1887
        %v1933 = vpop.f32.mrf.mxu0
        %v1934 = vadd.f32 0.0, %v1933
        %v1935 = vpop.f32.mrf.mxu0
        %1936 = vdwg.mxu0
        %v1937 = vadd.f32 %v1873, %v1908
        %v1938 = vadd.f32 %v1874, %v1921
        %v1939 = vadd.f32 %v1875, %v1934
        %s1940 = scalar_lea.vmem %s4, 10
        %v1941 = vld [vmem:[%s1940] sm:$0x3]
        %1942 = vrot.lane.b32.xlu0 %v1633, 108
        %v1943 = vpop.permute.xlu0 %1942
        %1944 = vrot.lane.b32.xlu0 %v1634, 108
        %v1945 = vpop.permute.xlu0 %1944
        %1946 = vrot.lane.b32.xlu0 %v1635, 108
        %v1947 = vpop.permute.xlu0 %1946
        %v1948 = vsel %vm713, %v1943, %v1945
        %v1949 = vsel %vm713, %v1945, %v1947
        %v1951 = vsel %vm1644, %v1941, 0
        %v1954 = vsel %vm1648, %v1948, 0
        %v1957 = vsel %vm1648, %v1949, 0
        %v1960 = vsel %vm1648, %v1947, 0
        %1962 = vmatpush.bf16.msra.mxu0 0
        %1963 = vmatpush.bf16.msra.mxu0 0
        %1964 = vmatpush.bf16.msra.mxu0 0
        %1965 = vmatpush.bf16.msra.mxu0 0
        %1966 = vmatpush.bf16.msra.mxu0 0
        %1967 = vmatpush.bf16.msra.mxu0 0
        %1968 = vmatpush.bf16.msra.mxu0 0
        %1969 = vmatpush.bf16.msra.mxu0 %v1954
        %1970 = vmatmul.bf16.gmra.mxu0 %v1951
        %v1971 = vpop.f32.mrf.mxu0
        %v1972 = vadd.f32 0.0, %v1971
        %v1973 = vpop.f32.mrf.mxu0
        %1974 = vdwg.mxu0
        %1975 = vmatpush.bf16.msra.mxu0 0
        %1976 = vmatpush.bf16.msra.mxu0 0
        %1977 = vmatpush.bf16.msra.mxu0 0
        %1978 = vmatpush.bf16.msra.mxu0 0
        %1979 = vmatpush.bf16.msra.mxu0 0
        %1980 = vmatpush.bf16.msra.mxu0 0
        %1981 = vmatpush.bf16.msra.mxu0 0
        %1982 = vmatpush.bf16.msra.mxu0 %v1957
        %1983 = vmatmul.bf16.gmra.mxu0 %v1951
        %v1984 = vpop.f32.mrf.mxu0
        %v1985 = vadd.f32 0.0, %v1984
        %v1986 = vpop.f32.mrf.mxu0
        %1987 = vdwg.mxu0
        %1988 = vmatpush.bf16.msra.mxu0 0
        %1989 = vmatpush.bf16.msra.mxu0 0
        %1990 = vmatpush.bf16.msra.mxu0 0
        %1991 = vmatpush.bf16.msra.mxu0 0
        %1992 = vmatpush.bf16.msra.mxu0 0
        %1993 = vmatpush.bf16.msra.mxu0 0
        %1994 = vmatpush.bf16.msra.mxu0 0
        %1995 = vmatpush.bf16.msra.mxu0 %v1960
        %1996 = vmatmul.bf16.gmra.mxu0 %v1951
        %v1997 = vpop.f32.mrf.mxu0
        %v1998 = vadd.f32 0.0, %v1997
        %v1999 = vpop.f32.mrf.mxu0
        %2000 = vdwg.mxu0
        %v2001 = vadd.f32 %v1937, %v1972
        %v2002 = vadd.f32 %v1938, %v1985
        %v2003 = vadd.f32 %v1939, %v1998
        %s2004 = scalar_lea.vmem %s4, 12
        %v2005 = vld [vmem:[%s2004] sm:$0x3]
        %2006 = vrot.lane.b32.xlu0 %v1633, 92
        %v2007 = vpop.permute.xlu0 %2006
        %2008 = vrot.lane.b32.xlu0 %v1634, 92
        %v2009 = vpop.permute.xlu0 %2008
        %2010 = vrot.lane.b32.xlu0 %v1635, 92
        %v2011 = vpop.permute.xlu0 %2010
        %v2012 = vsel %vm778, %v2007, %v2009
        %v2013 = vsel %vm778, %v2009, %v2011
        %v2015 = vsel %vm1644, %v2005, 0
        %v2018 = vsel %vm1648, %v2012, 0
        %v2021 = vsel %vm1648, %v2013, 0
        %v2024 = vsel %vm1648, %v2011, 0
        %2026 = vmatpush.bf16.msra.mxu0 0
        %2027 = vmatpush.bf16.msra.mxu0 0
        %2028 = vmatpush.bf16.msra.mxu0 0
        %2029 = vmatpush.bf16.msra.mxu0 0
        %2030 = vmatpush.bf16.msra.mxu0 0
        %2031 = vmatpush.bf16.msra.mxu0 0
        %2032 = vmatpush.bf16.msra.mxu0 0
        %2033 = vmatpush.bf16.msra.mxu0 %v2018
        %2034 = vmatmul.bf16.gmra.mxu0 %v2015
        %v2035 = vpop.f32.mrf.mxu0
        %v2036 = vadd.f32 0.0, %v2035
        %v2037 = vpop.f32.mrf.mxu0
        %2038 = vdwg.mxu0
        %2039 = vmatpush.bf16.msra.mxu0 0
        %2040 = vmatpush.bf16.msra.mxu0 0
        %2041 = vmatpush.bf16.msra.mxu0 0
        %2042 = vmatpush.bf16.msra.mxu0 0
        %2043 = vmatpush.bf16.msra.mxu0 0
        %2044 = vmatpush.bf16.msra.mxu0 0
        %2045 = vmatpush.bf16.msra.mxu0 0
        %2046 = vmatpush.bf16.msra.mxu0 %v2021
        %2047 = vmatmul.bf16.gmra.mxu0 %v2015
        %v2048 = vpop.f32.mrf.mxu0
        %v2049 = vadd.f32 0.0, %v2048
        %v2050 = vpop.f32.mrf.mxu0
        %2051 = vdwg.mxu0
        %2052 = vmatpush.bf16.msra.mxu0 0
        %2053 = vmatpush.bf16.msra.mxu0 0
        %2054 = vmatpush.bf16.msra.mxu0 0
        %2055 = vmatpush.bf16.msra.mxu0 0
        %2056 = vmatpush.bf16.msra.mxu0 0
        %2057 = vmatpush.bf16.msra.mxu0 0
        %2058 = vmatpush.bf16.msra.mxu0 0
        %2059 = vmatpush.bf16.msra.mxu0 %v2024
        %2060 = vmatmul.bf16.gmra.mxu0 %v2015
        %v2061 = vpop.f32.mrf.mxu0
        %v2062 = vadd.f32 0.0, %v2061
        %v2063 = vpop.f32.mrf.mxu0
        %2064 = vdwg.mxu0
        %v2065 = vadd.f32 %v2001, %v2036
        %v2066 = vadd.f32 %v2002, %v2049
        %v2067 = vadd.f32 %v2003, %v2062
        %s2068 = scalar_lea.vmem %s4, 14
        %v2069 = vld [vmem:[%s2068] sm:$0x3]
        %2070 = vrot.lane.b32.xlu0 %v1633, 91
        %v2071 = vpop.permute.xlu0 %2070
        %2072 = vrot.lane.b32.xlu0 %v1634, 91
        %v2073 = vpop.permute.xlu0 %2072
        %2074 = vrot.lane.b32.xlu0 %v1635, 91
        %v2075 = vpop.permute.xlu0 %2074
        %v2076 = vsel %vm843, %v2071, %v2073
        %v2077 = vsel %vm843, %v2073, %v2075
        %v2079 = vsel %vm1644, %v2069, 0
        %v2082 = vsel %vm1648, %v2076, 0
        %v2085 = vsel %vm1648, %v2077, 0
        %v2088 = vsel %vm1648, %v2075, 0
        %2090 = vmatpush.bf16.msra.mxu0 0
        %2091 = vmatpush.bf16.msra.mxu0 0
        %2092 = vmatpush.bf16.msra.mxu0 0
        %2093 = vmatpush.bf16.msra.mxu0 0
        %2094 = vmatpush.bf16.msra.mxu0 0
        %2095 = vmatpush.bf16.msra.mxu0 0
        %2096 = vmatpush.bf16.msra.mxu0 0
        %2097 = vmatpush.bf16.msra.mxu0 %v2082
        %2098 = vmatmul.bf16.gmra.mxu0 %v2079
        %v2099 = vpop.f32.mrf.mxu0
        %v2100 = vadd.f32 0.0, %v2099
        %v2101 = vpop.f32.mrf.mxu0
        %2102 = vdwg.mxu0
        %2103 = vmatpush.bf16.msra.mxu0 0
        %2104 = vmatpush.bf16.msra.mxu0 0
        %2105 = vmatpush.bf16.msra.mxu0 0
        %2106 = vmatpush.bf16.msra.mxu0 0
        %2107 = vmatpush.bf16.msra.mxu0 0
        %2108 = vmatpush.bf16.msra.mxu0 0
        %2109 = vmatpush.bf16.msra.mxu0 0
        %2110 = vmatpush.bf16.msra.mxu0 %v2085
        %2111 = vmatmul.bf16.gmra.mxu0 %v2079
        %v2112 = vpop.f32.mrf.mxu0
        %v2113 = vadd.f32 0.0, %v2112
        %v2114 = vpop.f32.mrf.mxu0
        %2115 = vdwg.mxu0
        %2116 = vmatpush.bf16.msra.mxu0 0
        %2117 = vmatpush.bf16.msra.mxu0 0
        %2118 = vmatpush.bf16.msra.mxu0 0
        %2119 = vmatpush.bf16.msra.mxu0 0
        %2120 = vmatpush.bf16.msra.mxu0 0
        %2121 = vmatpush.bf16.msra.mxu0 0
        %2122 = vmatpush.bf16.msra.mxu0 0
        %2123 = vmatpush.bf16.msra.mxu0 %v2088
        %2124 = vmatmul.bf16.gmra.mxu0 %v2079
        %v2125 = vpop.f32.mrf.mxu0
        %v2126 = vadd.f32 0.0, %v2125
        %v2127 = vpop.f32.mrf.mxu0
        %2128 = vdwg.mxu0
        %v2129 = vadd.f32 %v2065, %v2100
        %v2130 = vadd.f32 %v2066, %v2113
        %v2131 = vadd.f32 %v2067, %v2126
        %s2132 = scalar_lea.vmem %s4, 16
        %v2133 = vld [vmem:[%s2132] sm:$0x3]
        %2134 = vrot.lane.b32.xlu0 %v1633, 90
        %v2135 = vpop.permute.xlu0 %2134
        %2136 = vrot.lane.b32.xlu0 %v1634, 90
        %v2137 = vpop.permute.xlu0 %2136
        %2138 = vrot.lane.b32.xlu0 %v1635, 90
        %v2139 = vpop.permute.xlu0 %2138
        %v2140 = vsel %vm908, %v2135, %v2137
        %v2141 = vsel %vm908, %v2137, %v2139
        %v2143 = vsel %vm1644, %v2133, 0
        %v2146 = vsel %vm1648, %v2140, 0
        %v2149 = vsel %vm1648, %v2141, 0
        %v2152 = vsel %vm1648, %v2139, 0
        %2154 = vmatpush.bf16.msra.mxu0 0
        %2155 = vmatpush.bf16.msra.mxu0 0
        %2156 = vmatpush.bf16.msra.mxu0 0
        %2157 = vmatpush.bf16.msra.mxu0 0
        %2158 = vmatpush.bf16.msra.mxu0 0
        %2159 = vmatpush.bf16.msra.mxu0 0
        %2160 = vmatpush.bf16.msra.mxu0 0
        %2161 = vmatpush.bf16.msra.mxu0 %v2146
        %2162 = vmatmul.bf16.gmra.mxu0 %v2143
        %v2163 = vpop.f32.mrf.mxu0
        %v2164 = vadd.f32 0.0, %v2163
        %v2165 = vpop.f32.mrf.mxu0
        %2166 = vdwg.mxu0
        %2167 = vmatpush.bf16.msra.mxu0 0
        %2168 = vmatpush.bf16.msra.mxu0 0
        %2169 = vmatpush.bf16.msra.mxu0 0
        %2170 = vmatpush.bf16.msra.mxu0 0
        %2171 = vmatpush.bf16.msra.mxu0 0
        %2172 = vmatpush.bf16.msra.mxu0 0
        %2173 = vmatpush.bf16.msra.mxu0 0
        %2174 = vmatpush.bf16.msra.mxu0 %v2149
        %2175 = vmatmul.bf16.gmra.mxu0 %v2143
        %v2176 = vpop.f32.mrf.mxu0
        %v2177 = vadd.f32 0.0, %v2176
        %v2178 = vpop.f32.mrf.mxu0
        %2179 = vdwg.mxu0
        %2180 = vmatpush.bf16.msra.mxu0 0
        %2181 = vmatpush.bf16.msra.mxu0 0
        %2182 = vmatpush.bf16.msra.mxu0 0
        %2183 = vmatpush.bf16.msra.mxu0 0
        %2184 = vmatpush.bf16.msra.mxu0 0
        %2185 = vmatpush.bf16.msra.mxu0 0
        %2186 = vmatpush.bf16.msra.mxu0 0
        %2187 = vmatpush.bf16.msra.mxu0 %v2152
        %2188 = vmatmul.bf16.gmra.mxu0 %v2143
        %v2189 = vpop.f32.mrf.mxu0
        %v2190 = vadd.f32 0.0, %v2189
        %v2191 = vpop.f32.mrf.mxu0
        %2192 = vdwg.mxu0
        %v2193 = vadd.f32 %v2129, %v2164
        %v2194 = vadd.f32 %v2130, %v2177
        %v2195 = vadd.f32 %v2131, %v2190
        %v2196 = vld [vmem:[%s7] sm:$0xf]
        %2198 = vset.pattern.permute.xlu0 0
        %2199 = vperm.xlu0 %2198, %v2196
        %v2200 = vpop.permute.xlu0 %2199
        %v2202 = vadd.f32 %v2193, %v2200
        %v2203 = vadd.f32 %v2194, %v2200
        %v2204 = vadd.f32 %v2195, %v2200
        %v2205 = vmax.f32 %v2202, 0.0
        %v2206 = vmax.f32 %v2203, 0.0
        %v2207 = vmax.f32 %v2204, 0.0
        %v2208 = vmul.f32 %v2205, %v978
        %v2209 = vmul.f32 %v2206, %v979
        %v2210 = vmul.f32 %v2207, %v980
        %v2211 = vpack.c.bf16 %v2209, %v2208
        %v2212 = vpack.c.bf16 %v2210, %v2210
        %v2215 = vrot.slane %v2211, 6
        %v2216 = vrot.slane %v2212, 6
        %2217 = vrot.lane.b32.xlu0 %v2215, 19
        %v2218 = vpop.permute.xlu0 %2217
        %2219 = vrot.lane.b32.xlu0 %v2216, 19
        %v2220 = vpop.permute.xlu0 %2219
        %v2221 = vrot.slane %v2218, 4
        %v2222 = vsel %vm998, %v2221, %v2218
        %v2223 = vsel %vm998, %v2221, %v2220
        %2226 = vst.msk [vmem:[#allocation2 + $0xc] sm:$0xcc] %vm1005, %v2222
        %2227 = vst.msk [vmem:[#allocation2 + $0x14] sm:$0xc] %vm1007, %v2223
        %v2228 = vld [vmem:[%s8] sm:$0x3]
        %v2229 = vld [vmem:[#allocation2] sm:$0xff]
        %v2230 = vld [vmem:[#allocation2 + $0x8] sm:$0xf]
        %v2231 = vld [vmem:[#allocation2 + $0xc] sm:$0xff]
        %v2232 = vld [vmem:[#allocation2 + $0x14] sm:$0xf]
        %v2237 = vunpack.c.l.b16 %v2229
        %v2238 = vunpack.c.h.b16 %v2229
        %v2239 = vunpack.c.l.b16 %v2230
        %v2240 = vunpack.c.l.b16 %v2231
        %v2241 = vunpack.c.h.b16 %v2231
        %v2242 = vunpack.c.l.b16 %v2232
        %v2243 = vpack.c.b16 %v2240, %v2237
        %v2244 = vpack.c.b16 %v2241, %v2238
        %v2245 = vpack.c.b16 %v2242, %v2239
        %vm2249 = vcmask 130048
        %v2251 = vsel %vm2249, %v2228, 0
        %2253 = vmatpush.bf16.msra.mxu0 0
        %2254 = vmatpush.bf16.msra.mxu0 0
        %2255 = vmatpush.bf16.msra.mxu0 0
        %2256 = vmatpush.bf16.msra.mxu0 0
        %2257 = vmatpush.bf16.msra.mxu0 0
        %2258 = vmatpush.bf16.msra.mxu0 0
        %2259 = vmatpush.bf16.msra.mxu0 0
        %2260 = vmatpush.bf16.msra.mxu0 %v2243
        %2261 = vmatmul.bf16.gmra.mxu0 %v2251
        %v2262 = vpop.f32.mrf.mxu0
        %v2263 = vadd.f32 0.0, %v2262
        %v2264 = vpop.f32.mrf.mxu0
        %2265 = vdwg.mxu0
        %2266 = vmatpush.bf16.msra.mxu0 0
        %2267 = vmatpush.bf16.msra.mxu0 0
        %2268 = vmatpush.bf16.msra.mxu0 0
        %2269 = vmatpush.bf16.msra.mxu0 0
        %2270 = vmatpush.bf16.msra.mxu0 0
        %2271 = vmatpush.bf16.msra.mxu0 0
        %2272 = vmatpush.bf16.msra.mxu0 0
        %2273 = vmatpush.bf16.msra.mxu0 %v2244
        %2274 = vmatmul.bf16.gmra.mxu0 %v2251
        %v2275 = vpop.f32.mrf.mxu0
        %v2276 = vadd.f32 0.0, %v2275
        %v2277 = vpop.f32.mrf.mxu0
        %2278 = vdwg.mxu0
        %2279 = vmatpush.bf16.msra.mxu0 0
        %2280 = vmatpush.bf16.msra.mxu0 0
        %2281 = vmatpush.bf16.msra.mxu0 0
        %2282 = vmatpush.bf16.msra.mxu0 0
        %2283 = vmatpush.bf16.msra.mxu0 0
        %2284 = vmatpush.bf16.msra.mxu0 0
        %2285 = vmatpush.bf16.msra.mxu0 0
        %2286 = vmatpush.bf16.msra.mxu0 %v2245
        %2287 = vmatmul.bf16.gmra.mxu0 %v2251
        %v2288 = vpop.f32.mrf.mxu0
        %v2289 = vadd.f32 0.0, %v2288
        %v2290 = vpop.f32.mrf.mxu0
        %2291 = vdwg.mxu0
        %v2292 = vld [vmem:[%s357] sm:$0xff]
        %v2293 = vld [vmem:[%s357 + $0x8] sm:$0xf]
        %v2296 = vrot.slane %v2276, 4
        %v2297 = vsel %vm1034, %v2263, %v2296
        %v2299 = vadd.f32 %v2292, %v2297
        %v2300 = vadd.f32 %v2293, %v2289
        %v2301 = vld [vmem:[%s9] sm:$0xf]
        %2303 = vset.pattern.permute.xlu0 0
        %2304 = vperm.xlu0 %2303, %v2301
        %v2305 = vpop.permute.xlu0 %2304
        %v2307 = vunpack.c.l.s4 839922192
        %v2308 = vunpack.c.0.s8 %v2307
        %v2309 = vperm.slane %v2305, %v2308
        %v2311 = vadd.f32 %v2299, %v2309
        %v2312 = vadd.f32 %v2300, %v2309
        %2313 = vst [vmem:[%s352] sm:$0xff] %v2311
        %2314 = vst.msk [vmem:[%s352 + $0x8] sm:$0xf] %vm381, %v2312
        %s2315 = sand.u32 %s247, 1
        %s2316 = scalar_lea.sflag [#allocation4], %s2315
        %s2317 = sand.u32 %s247, 1
        %s2318 = smul.addr %s2317, 12
        %s2319 = scalar_lea.vmem [#allocation3], %s2318
        // Predicated region
        $region61: #{tpu_custom_call.1} parent=59 // pred_check
          %p2320 = pneg %p257
        $region62: #{tpu_custom_call.1} parent=59 // pred_check_branch
          %2322 = sbr.rel (%p2320) target = $region64
        $region63: #{tpu_custom_call.1} parent=59 // pred_region
          %2324 = vsyncadd %s2316, 0
          %s2325 = smul.addr %s24, 3
          %s2326 = smul.addr %s2325, 4
          %s2327 = scalar_lea.hbm %s10, %s2326
          %s2329 = sshll.u32 %s2319, 4
          %s2330 = int_to_ptr.vmem [resolvable:$true] %s2329
          %s2331 = sshll.u32 %s2327, 4
          %s2332 = int_to_ptr.hbm [resolvable:$true] %s2331
          %2334 = dma.vmem_to_hbm [thread:$0]  %s2330, 192, %s2332, %s2316
        $region64: #{tpu_custom_call.1} parent=59 // pred_fallthru
          _
      $region60: #{tpu_custom_call.1} parent=5 // pred_fallthru
        _
      %p2335 = scmp.le.s32.totalorder 2, %s19
      // Predicated region
      $region65: #{tpu_custom_call.1} parent=5 // pred_check
        %p2336 = pneg %p2335
      $region66: #{tpu_custom_call.1} parent=5 // pred_check_branch
        %2338 = sbr.rel (%p2336) target = $region68
      $region67: #{tpu_custom_call.1} parent=5 // pred_region
        %s2339 = ssub.s32 %s19, 2
        // Predicated region
        $region69: #{tpu_custom_call.1} parent=67 // pred_check
          %p2340 = pneg %p263
        $region70: #{tpu_custom_call.1} parent=67 // pred_check_branch
          %2342 = sbr.rel (%p2340) target = $region72
        $region71: #{tpu_custom_call.1} parent=67 // pred_region
          %s2343 = sand.u32 %s248, 1
          %s2344 = scalar_lea.sflag [#allocation4], %s2343
          %s2345 = sand.u32 %s248, 1
          %s2346 = smul.addr %s2345, 12
          %s2347 = scalar_lea.vmem [#allocation3], %s2346
          %2349 = dma.done %s2344, 192
        $region72: #{tpu_custom_call.1} parent=67 // pred_fallthru
          _
      $region68: #{tpu_custom_call.1} parent=5 // pred_fallthru
        _
    $region6: #{tpu_custom_call.1} parent=1 // loop_footer
      %s23 = sadd.s32 1, %s19
    $region7: #{tpu_custom_call.1} parent=1 // loop_footer_branch
      %18 = sbr.rel target = $region3
    $region8: #{tpu_custom_call.1} parent=1 // loop_exit
      _
    %2350 = vsyncpa [#allocation4], 1
    %s2351 = scalar_lea.sflag [#allocation4], 1
    %2352 = vsyncpa %s2351, 1

</llo_original>
